<compile_context>
chip_gen: v7x
topology: tpu7x:2x2x1
jax: 0.10.0
libtpu: 0.0.40
codegen_flags: <defaults>
</compile_context>

<pallas_src>
import functools

import jax
import jax.numpy as jnp
from jax.experimental import pallas as pl
from jax.experimental.pallas import tpu as pltpu

PATCH = 16
K2 = PATCH * PATCH          # 256
KCAT = 2 * K2               # 512: both priors' patches concatenated
LANES = 128
DEFAULT_ROW_TILE = 512      # measured sweet spot for mem-bound tiled kernels


def _round_up(n, m):
    return (n + m - 1) // m * m


def _cdaam_kernel(x_ref, p_ref, w_ref, b_ref, o_ref):
    # Single MXU matmul (bf16 in, f32 accumulate) + fused VPU epilogue.
    acc = jnp.dot(p_ref[...], w_ref[...], preferred_element_type=jnp.float32)
    o_ref[...] = (x_ref[...] * (acc + b_ref[...])).astype(o_ref.dtype)


@functools.partial(jax.jit, static_argnames=("row_tile",))
def _cdaam_pallas(x_nc, pcat, wcat, bias, row_tile):
    Np, Cp = x_nc.shape
    grid = (Np // row_tile,)            # Np is pre-padded -> exact division
    return pl.pallas_call(
        _cdaam_kernel,
        out_shape=jax.ShapeDtypeStruct((Np, Cp), x_nc.dtype),
        grid_spec=pltpu.PrefetchScalarGridSpec(
            num_scalar_prefetch=0,
            grid=grid,
            in_specs=[
                pl.BlockSpec((row_tile, Cp), lambda i: (i, 0)),     # x   (f32)
                pl.BlockSpec((row_tile, KCAT), lambda i: (i, 0)),   # [p0|p1] bf16
                pl.BlockSpec((KCAT, Cp), lambda i: (0, 0)),         # [W0;-W1] bf16
                pl.BlockSpec((1, Cp), lambda i: (0, 0)),            # 1+b0-b1 f32
            ],
            out_specs=pl.BlockSpec((row_tile, Cp), lambda i: (i, 0)),
        ),
        compiler_params=pltpu.CompilerParams(dimension_semantics=("parallel",)),
    )(x_nc, pcat, wcat, bias)


def _patchify(p):
    """(B, H, W) -> (B*Ho*Wo, 256), patch flattened row-major (kh, kw)."""
    B, H, W = p.shape
    Ho, Wo = H // PATCH, W // PATCH
    p = p.reshape(B, Ho, PATCH, Wo, PATCH).transpose(0, 1, 3, 2, 4)
    return p.reshape(B * Ho * Wo, K2)


@functools.partial(jax.jit, static_argnames=("row_tile",))
def cdaam_forward(x_nchw, priors_nchw, w0_oihw, b0_vec, w1_oihw, b1_vec,
                  row_tile=DEFAULT_ROW_TILE):
    """x_nchw: (B, C, Ho, Wo); priors_nchw: (B, 2, H, W), H=Ho*16, W=Wo*16."""
    B, C, Ho, Wo = x_nchw.shape
    N = B * Ho * Wo
    Np = _round_up(N, row_tile)     # no silently dropped tail tokens
    Cp = _round_up(C, LANES)        # lane-dense output / matmul N-dim

    # Token-major, channel-last activations (f32), zero-padded.
    x_nc = x_nchw.transpose(0, 2, 3, 1).reshape(N, C)
    x_nc = jnp.pad(x_nc, ((0, Np - N), (0, Cp - C)))

    # Patchify + concat + bf16 cast + pad: one fused XLA producer.
    pcat = jnp.concatenate(
        [_patchify(priors_nchw[:, 0, :, :]), _patchify(priors_nchw[:, 1, :, :])],
        axis=1).astype(jnp.bfloat16)
    pcat = jnp.pad(pcat, ((0, Np - N), (0, 0)))

    # Fused weight [W0 ; -W1] (bf16) and bias 1 + b0 - b1 (f32).
    wcat = jnp.concatenate(
        [w0_oihw.reshape(C, K2).T, -w1_oihw.reshape(C, K2).T], axis=0)
    wcat = jnp.pad(wcat, ((0, 0), (0, Cp - C))).astype(jnp.bfloat16)
    bias = jnp.pad((1.0 + b0_vec - b1_vec).reshape(1, C), ((0, 0), (0, Cp - C)))
    bias = bias.astype(jnp.float32)

    out = _cdaam_pallas(x_nc, pcat, wcat, bias, row_tile)
    out = out[:N, :C].reshape(B, Ho, Wo, C).transpose(0, 3, 1, 2)
    return out


def _reference(x_nchw, priors_nchw, w0_oihw, b0_vec, w1_oihw, b1_vec):
    dn = ("NCHW", "OIHW", "NCHW")
    p0 = priors_nchw[:, 0:1, :, :]
    p1 = priors_nchw[:, 1:2, :, :]
    c0 = jax.lax.conv_general_dilated(p0, w0_oihw, (PATCH, PATCH), "VALID",
                                      dimension_numbers=dn) + b0_vec[None, :, None, None]
    c1 = jax.lax.conv_general_dilated(p1, w1_oihw, (PATCH, PATCH), "VALID",
                                      dimension_numbers=dn) + b1_vec[None, :, None, None]
    return x_nchw + c0 * x_nchw - c1 * x_nchw


if __name__ == "__main__":
    # Conv2d(1, C, 16, 16): priors split per-channel before the convs.
    # C=128 keeps the channel axis naturally lane-dense; H=W=64 -> Ho=Wo=4.
    B, C, H, W = 2, 128, 64, 64
    Ho, Wo = H // PATCH, W // PATCH

    key = jax.random.PRNGKey(0)
    kx, kp, kw0, kb0, kw1, kb1 = jax.random.split(key, 6)

    x = jax.random.normal(kx, (B, C, Ho, Wo), dtype=jnp.float32)
    priors = jax.random.normal(kp, (B, 2, H, W), dtype=jnp.float32)

    w0 = jax.random.normal(kw0, (C, 1, PATCH, PATCH), dtype=jnp.float32) * 0.05
    b0 = jax.random.normal(kb0, (C,), dtype=jnp.float32) * 0.05
    w1 = jax.random.normal(kw1, (C, 1, PATCH, PATCH), dtype=jnp.float32) * 0.05
    b1 = jax.random.normal(kb1, (C,), dtype=jnp.float32) * 0.05

    out = cdaam_forward(x, priors, w0, b0, w1, b1, row_tile=DEFAULT_ROW_TILE)
    out = jax.block_until_ready(out)

    ref = jax.block_until_ready(_reference(x, priors, w0, b0, w1, b1))
    assert out.shape == (B, C, Ho, Wo)
    # Tolerance loosened vs the all-f32 version: patch/weight streams are bf16
    # (f32 accumulation), as recommended by the perf review.
    assert jnp.allclose(out, ref, atol=5e-2, rtol=5e-2), "mismatch vs reference"

    print("KERNEL_OK")
</pallas_src>

<mosaic_0001>
module attributes {stable_mosaic.version = 11 : i64} {
  func.func @_cdaam_kernel(%arg0: i32, %arg1: memref<512x128xf32, #tpu.memory_space<vmem>>, %arg2: memref<512x512xbf16, #tpu.memory_space<vmem>>, %arg3: memref<512x128xbf16, #tpu.memory_space<vmem>>, %arg4: memref<1x128xf32, #tpu.memory_space<vmem>>, %arg5: memref<512x128xf32, #tpu.memory_space<vmem>>) attributes {dimension_semantics = [#tpu.dimension_semantics<parallel>], iteration_bounds = array<i64: 1>, scalar_prefetch = 0 : i64, scratch_operands = 0 : i64, tpu.core_type = #tpu.core_type<tc>, window_params = [{transform_indices = @transform_0, window_bounds = array<i64: 512, 128>}, {transform_indices = @transform_1, window_bounds = array<i64: 512, 512>}, {pipeline_mode = #tpu.pipeline_mode<synchronous>, transform_indices = @transform_2, window_bounds = array<i64: 512, 128>}, {pipeline_mode = #tpu.pipeline_mode<synchronous>, transform_indices = @transform_3, window_bounds = array<i64: 1, 128>}, {transform_indices = @transform_4, window_bounds = array<i64: 512, 128>}]} {
    %c0 = arith.constant 0 : index
    %c0_0 = arith.constant 0 : index
    %0 = vector.load %arg2[%c0, %c0_0] : memref<512x512xbf16, #tpu.memory_space<vmem>>, vector<512x512xbf16>
    %c0_1 = arith.constant 0 : index
    %c0_2 = arith.constant 0 : index
    %1 = vector.load %arg3[%c0_1, %c0_2] : memref<512x128xbf16, #tpu.memory_space<vmem>>, vector<512x128xbf16>
    %cst = arith.constant dense<0.000000e+00> : vector<512x128xf32>
    %2 = tpu.matmul %0, %1, %cst {dimension_numbers = #tpu.dot_dimension_numbers<[1], [0], [0], [1], [0, 0, 1, 1], [], []>} : vector<512x512xbf16>, vector<512x128xbf16>, vector<512x128xf32> -> vector<512x128xf32>
    %c0_3 = arith.constant 0 : index
    %c0_4 = arith.constant 0 : index
    %3 = vector.load %arg1[%c0_3, %c0_4] : memref<512x128xf32, #tpu.memory_space<vmem>>, vector<512x128xf32>
    %c0_5 = arith.constant 0 : index
    %c0_6 = arith.constant 0 : index
    %4 = vector.load %arg4[%c0_5, %c0_6] : memref<1x128xf32, #tpu.memory_space<vmem>>, vector<1x128xf32>
    %5 = vector.broadcast %4 : vector<1x128xf32> to vector<512x128xf32>
    %6 = arith.addf %2, %5 : vector<512x128xf32>
    %7 = arith.mulf %3, %6 : vector<512x128xf32>
    %c0_7 = arith.constant 0 : index
    %c0_8 = arith.constant 0 : index
    %8 = vector.load %arg5[%c0_7, %c0_8] : memref<512x128xf32, #tpu.memory_space<vmem>>, vector<512x128xf32>
    tpu.vector_store %arg5[%c0_7, %c0_8], %7 {strides = array<i32>} : memref<512x128xf32, #tpu.memory_space<vmem>>, vector<512x128xf32>,
    return
  }
  func.func @transform_0(%arg0: i32) -> (i32, i32) {
    %c0_i32 = arith.constant 0 : i32
    %c0_i32_0 = arith.constant 0 : i32
    return %arg0, %c0_i32 : i32, i32
  }
  func.func @transform_1(%arg0: i32) -> (i32, i32) {
    %c0_i32 = arith.constant 0 : i32
    %c0_i32_0 = arith.constant 0 : i32
    return %arg0, %c0_i32 : i32, i32
  }
  func.func @transform_2(%arg0: i32) -> (i32, i32) {
    %c0_i32 = arith.constant 0 : i32
    %c0_i32_0 = arith.constant 0 : i32
    %c0_i32_1 = arith.constant 0 : i32
    return %c0_i32, %c0_i32_0 : i32, i32
  }
  func.func @transform_3(%arg0: i32) -> (i32, i32) {
    %c0_i32 = arith.constant 0 : i32
    %c0_i32_0 = arith.constant 0 : i32
    %c0_i32_1 = arith.constant 0 : i32
    return %c0_i32, %c0_i32_0 : i32, i32
  }
  func.func @transform_4(%arg0: i32) -> (i32, i32) {
    %c0_i32 = arith.constant 0 : i32
    %c0_i32_0 = arith.constant 0 : i32
    return %arg0, %c0_i32 : i32, i32
  }
}

</mosaic_0001>

<llo_original>
// kernel: _cdaam_pallas.1
$region0: #{_cdaam_pallas.1}
  #allocation0 [shape = 'u32[]', space=smem, size = 0x4, offset = 0x4, fixed_abs, tag = 'smem constant byte address 0x4 - core index']
  #allocation1 [shape = 'u32[144,128]{1,0:T(1,128)}', space=vmem, size = 0x12000, scoped, tag = 'internal scratch']
  %s0 = inlined_call_operand.hbm [shape: f32[512,128], index: 0, kind: input, shape index: {}]
  %s1 = inlined_call_operand.hbm [shape: bf16[512,512], index: 1, kind: input, shape index: {}]
  %s2 = inlined_call_operand.hbm [shape: bf16[512,128], index: 2, kind: input, shape index: {}]
  %s3 = inlined_call_operand.vmem [shape: f32[1,128], index: 3, kind: input, shape index: {}]
  %s4 = inlined_call_operand.hbm [shape: f32[512,128], index: 4, kind: output, shape index: {}]
  %s5 = sld [smem:[#allocation0]]
  $region38: #{_cdaam_pallas.1} parent=0
    _
  %s7 = ssub.s32 1, %s5
  %s8 = scalar_select 0, %s7, %s5
  $region1: #{_cdaam_pallas.1} parent=0
    #allocation2 [shape = 'u8[262144]{0}', space=vmem, size = 0x40000, scoped, tag = 'input window, operand 0, single buffered']
    #allocation3 [shape = 's32[1]{0}', space=sflag, size = 0x4, scoped, tag = 'scoped memory for _cdaam_pallas.1']
    #allocation4 [shape = 's32[1]{0}', space=sflag, size = 0x4, scoped, tag = 'scoped memory for _cdaam_pallas.1']
    #allocation5 [shape = 'u8[524288]{0}', space=vmem, size = 0x80000, scoped, tag = 'input window, operand 1, single buffered']
    #allocation6 [shape = 's32[1]{0}', space=sflag, size = 0x4, scoped, tag = 'scoped memory for _cdaam_pallas.1']
    #allocation7 [shape = 'u8[131072]{0}', space=vmem, size = 0x20000, scoped, tag = 'input window, operand 2, single buffered']
    #allocation8 [shape = 'u8[262144]{0}', space=vmem, size = 0x40000, scoped, tag = 'output window, operand 0, single buffered']
    %9 = vsyncpa [#allocation3], 0
    %10 = vsyncpa [#allocation6], 0
    %11 = vsyncpa [#allocation4], 0
    // Predicated region
    $region2: #{_cdaam_pallas.1} parent=1 // pred_check
      _
    $region3: #{_cdaam_pallas.1} parent=1 // pred_check_branch
      %13 = sbr.rel (0) target = $region5
    $region4: #{_cdaam_pallas.1} parent=1 // pred_region
      %s15 = ssub.s32 8192, 8192
      %16 = vsyncadd [#allocation3], %s15
      %s17 = sshll.u32 [#allocation2], 4
      %s18 = int_to_ptr.vmem [resolvable:$true] %s17
      %23 = dma.hbm_to_vmem [thread:$0]  %s0, 8192, %s18, [#allocation3], 128, 128, 8
    $region5: #{_cdaam_pallas.1} parent=1 // pred_fallthru
      _
    // Predicated region
    $region6: #{_cdaam_pallas.1} parent=1 // pred_check
      _
    $region7: #{_cdaam_pallas.1} parent=1 // pred_check_branch
      %25 = sbr.rel (0) target = $region9
    $region8: #{_cdaam_pallas.1} parent=1 // pred_region
      %s27 = ssub.s32 16384, 16384
      %28 = vsyncadd [#allocation6], %s27
      %s29 = sshll.u32 [#allocation5], 4
      %s30 = int_to_ptr.vmem [resolvable:$true] %s29
      %35 = dma.hbm_to_vmem [thread:$0]  %s1, 16384, %s30, [#allocation6], 256, 256, 16
    $region9: #{_cdaam_pallas.1} parent=1 // pred_fallthru
      _
    // Predicated region
    $region10: #{_cdaam_pallas.1} parent=1 // pred_check
      _
    $region11: #{_cdaam_pallas.1} parent=1 // pred_check_branch
      %37 = sbr.rel (0) target = $region13
    $region12: #{_cdaam_pallas.1} parent=1 // pred_region
      %s39 = ssub.s32 4096, 4096
      %40 = vsyncadd [#allocation6], %s39
      %s41 = sshll.u32 [#allocation7], 4
      %s42 = int_to_ptr.vmem [resolvable:$true] %s41
      %47 = dma.hbm_to_vmem [thread:$0]  %s2, 4096, %s42, [#allocation6], 64, 64, 4
    $region13: #{_cdaam_pallas.1} parent=1 // pred_fallthru
      _
    // Predicated region
    $region14: #{_cdaam_pallas.1} parent=1 // pred_check
      _
    $region15: #{_cdaam_pallas.1} parent=1 // pred_check_branch
      %49 = sbr.rel (0) target = $region17
    $region16: #{_cdaam_pallas.1} parent=1 // pred_region
      _
    $region17: #{_cdaam_pallas.1} parent=1 // pred_fallthru
      _
    // Predicated region
    $region18: #{_cdaam_pallas.1} parent=1 // pred_check
      _
    $region19: #{_cdaam_pallas.1} parent=1 // pred_check_branch
      %51 = sbr.rel (0) target = $region21
    $region20: #{_cdaam_pallas.1} parent=1 // pred_region
      %52 = dma.done [#allocation3], 8192
    $region21: #{_cdaam_pallas.1} parent=1 // pred_fallthru
      _
    // Predicated region
    $region22: #{_cdaam_pallas.1} parent=1 // pred_check
      _
    $region23: #{_cdaam_pallas.1} parent=1 // pred_check_branch
      %54 = sbr.rel (0) target = $region25
    $region24: #{_cdaam_pallas.1} parent=1 // pred_region
      %55 = dma.done [#allocation6], 16384
    $region25: #{_cdaam_pallas.1} parent=1 // pred_fallthru
      _
    // Predicated region
    $region26: #{_cdaam_pallas.1} parent=1 // pred_check
      _
    $region27: #{_cdaam_pallas.1} parent=1 // pred_check_branch
      %57 = sbr.rel (0) target = $region29
    $region28: #{_cdaam_pallas.1} parent=1 // pred_region
      %58 = dma.done [#allocation6], 4096
    $region29: #{_cdaam_pallas.1} parent=1 // pred_fallthru
      _
    %v60 = vld [vmem:[#allocation5] sm:$0xff]
    %v61 = vld [vmem:[#allocation5 + $0x8] sm:$0xff]
    %v62 = vld [vmem:[#allocation5 + $0x10] sm:$0xff]
    %v63 = vld [vmem:[#allocation5 + $0x18] sm:$0xff]
    %v64 = vld [vmem:[#allocation5 + $0x20] sm:$0xff]
    %v65 = vld [vmem:[#allocation5 + $0x28] sm:$0xff]
    %v66 = vld [vmem:[#allocation5 + $0x30] sm:$0xff]
    %v67 = vld [vmem:[#allocation5 + $0x38] sm:$0xff]
    %v68 = vld [vmem:[#allocation5 + $0x40] sm:$0xff]
    %v69 = vld [vmem:[#allocation5 + $0x48] sm:$0xff]
    %v70 = vld [vmem:[#allocation5 + $0x50] sm:$0xff]
    %v71 = vld [vmem:[#allocation5 + $0x58] sm:$0xff]
    %v72 = vld [vmem:[#allocation5 + $0x60] sm:$0xff]
    %v73 = vld [vmem:[#allocation5 + $0x68] sm:$0xff]
    %v74 = vld [vmem:[#allocation5 + $0x70] sm:$0xff]
    %v75 = vld [vmem:[#allocation5 + $0x78] sm:$0xff]
    %v76 = vld [vmem:[#allocation5 + $0x80] sm:$0xff]
    %v77 = vld [vmem:[#allocation5 + $0x88] sm:$0xff]
    %v78 = vld [vmem:[#allocation5 + $0x90] sm:$0xff]
    %v79 = vld [vmem:[#allocation5 + $0x98] sm:$0xff]
    %v80 = vld [vmem:[#allocation5 + $0xa0] sm:$0xff]
    %v81 = vld [vmem:[#allocation5 + $0xa8] sm:$0xff]
    %v82 = vld [vmem:[#allocation5 + $0xb0] sm:$0xff]
    %v83 = vld [vmem:[#allocation5 + $0xb8] sm:$0xff]
    %v84 = vld [vmem:[#allocation5 + $0xc0] sm:$0xff]
    %v85 = vld [vmem:[#allocation5 + $0xc8] sm:$0xff]
    %v86 = vld [vmem:[#allocation5 + $0xd0] sm:$0xff]
    %v87 = vld [vmem:[#allocation5 + $0xd8] sm:$0xff]
    %v88 = vld [vmem:[#allocation5 + $0xe0] sm:$0xff]
    %v89 = vld [vmem:[#allocation5 + $0xe8] sm:$0xff]
    %v90 = vld [vmem:[#allocation5 + $0xf0] sm:$0xff]
    %v91 = vld [vmem:[#allocation5 + $0xf8] sm:$0xff]
    %v92 = vld [vmem:[#allocation5 + $0x100] sm:$0xff]
    %v93 = vld [vmem:[#allocation5 + $0x108] sm:$0xff]
    %v94 = vld [vmem:[#allocation5 + $0x110] sm:$0xff]
    %v95 = vld [vmem:[#allocation5 + $0x118] sm:$0xff]
    %v96 = vld [vmem:[#allocation5 + $0x120] sm:$0xff]
    %v97 = vld [vmem:[#allocation5 + $0x128] sm:$0xff]
    %v98 = vld [vmem:[#allocation5 + $0x130] sm:$0xff]
    %v99 = vld [vmem:[#allocation5 + $0x138] sm:$0xff]
    %v100 = vld [vmem:[#allocation5 + $0x140] sm:$0xff]
    %v101 = vld [vmem:[#allocation5 + $0x148] sm:$0xff]
    %v102 = vld [vmem:[#allocation5 + $0x150] sm:$0xff]
    %v103 = vld [vmem:[#allocation5 + $0x158] sm:$0xff]
    %v104 = vld [vmem:[#allocation5 + $0x160] sm:$0xff]
    %v105 = vld [vmem:[#allocation5 + $0x168] sm:$0xff]
    %v106 = vld [vmem:[#allocation5 + $0x170] sm:$0xff]
    %v107 = vld [vmem:[#allocation5 + $0x178] sm:$0xff]
    %v108 = vld [vmem:[#allocation5 + $0x180] sm:$0xff]
    %v109 = vld [vmem:[#allocation5 + $0x188] sm:$0xff]
    %v110 = vld [vmem:[#allocation5 + $0x190] sm:$0xff]
    %v111 = vld [vmem:[#allocation5 + $0x198] sm:$0xff]
    %v112 = vld [vmem:[#allocation5 + $0x1a0] sm:$0xff]
    %v113 = vld [vmem:[#allocation5 + $0x1a8] sm:$0xff]
    %v114 = vld [vmem:[#allocation5 + $0x1b0] sm:$0xff]
    %v115 = vld [vmem:[#allocation5 + $0x1b8] sm:$0xff]
    %v116 = vld [vmem:[#allocation5 + $0x1c0] sm:$0xff]
    %v117 = vld [vmem:[#allocation5 + $0x1c8] sm:$0xff]
    %v118 = vld [vmem:[#allocation5 + $0x1d0] sm:$0xff]
    %v119 = vld [vmem:[#allocation5 + $0x1d8] sm:$0xff]
    %v120 = vld [vmem:[#allocation5 + $0x1e0] sm:$0xff]
    %v121 = vld [vmem:[#allocation5 + $0x1e8] sm:$0xff]
    %v122 = vld [vmem:[#allocation5 + $0x1f0] sm:$0xff]
    %v123 = vld [vmem:[#allocation5 + $0x1f8] sm:$0xff]
    %v124 = vld [vmem:[#allocation5 + $0x200] sm:$0xff]
    %v125 = vld [vmem:[#allocation5 + $0x208] sm:$0xff]
    %v126 = vld [vmem:[#allocation5 + $0x210] sm:$0xff]
    %v127 = vld [vmem:[#allocation5 + $0x218] sm:$0xff]
    %v128 = vld [vmem:[#allocation5 + $0x220] sm:$0xff]
    %v129 = vld [vmem:[#allocation5 + $0x228] sm:$0xff]
    %v130 = vld [vmem:[#allocation5 + $0x230] sm:$0xff]
    %v131 = vld [vmem:[#allocation5 + $0x238] sm:$0xff]
    %v132 = vld [vmem:[#allocation5 + $0x240] sm:$0xff]
    %v133 = vld [vmem:[#allocation5 + $0x248] sm:$0xff]
    %v134 = vld [vmem:[#allocation5 + $0x250] sm:$0xff]
    %v135 = vld [vmem:[#allocation5 + $0x258] sm:$0xff]
    %v136 = vld [vmem:[#allocation5 + $0x260] sm:$0xff]
    %v137 = vld [vmem:[#allocation5 + $0x268] sm:$0xff]
    %v138 = vld [vmem:[#allocation5 + $0x270] sm:$0xff]
    %v139 = vld [vmem:[#allocation5 + $0x278] sm:$0xff]
    %v140 = vld [vmem:[#allocation5 + $0x280] sm:$0xff]
    %v141 = vld [vmem:[#allocation5 + $0x288] sm:$0xff]
    %v142 = vld [vmem:[#allocation5 + $0x290] sm:$0xff]
    %v143 = vld [vmem:[#allocation5 + $0x298] sm:$0xff]
    %v144 = vld [vmem:[#allocation5 + $0x2a0] sm:$0xff]
    %v145 = vld [vmem:[#allocation5 + $0x2a8] sm:$0xff]
    %v146 = vld [vmem:[#allocation5 + $0x2b0] sm:$0xff]
    %v147 = vld [vmem:[#allocation5 + $0x2b8] sm:$0xff]
    %v148 = vld [vmem:[#allocation5 + $0x2c0] sm:$0xff]
    %v149 = vld [vmem:[#allocation5 + $0x2c8] sm:$0xff]
    %v150 = vld [vmem:[#allocation5 + $0x2d0] sm:$0xff]
    %v151 = vld [vmem:[#allocation5 + $0x2d8] sm:$0xff]
    %v152 = vld [vmem:[#allocation5 + $0x2e0] sm:$0xff]
    %v153 = vld [vmem:[#allocation5 + $0x2e8] sm:$0xff]
    %v154 = vld [vmem:[#allocation5 + $0x2f0] sm:$0xff]
    %v155 = vld [vmem:[#allocation5 + $0x2f8] sm:$0xff]
    %v156 = vld [vmem:[#allocation5 + $0x300] sm:$0xff]
    %v157 = vld [vmem:[#allocation5 + $0x308] sm:$0xff]
    %v158 = vld [vmem:[#allocation5 + $0x310] sm:$0xff]
    %v159 = vld [vmem:[#allocation5 + $0x318] sm:$0xff]
    %v160 = vld [vmem:[#allocation5 + $0x320] sm:$0xff]
    %v161 = vld [vmem:[#allocation5 + $0x328] sm:$0xff]
    %v162 = vld [vmem:[#allocation5 + $0x330] sm:$0xff]
    %v163 = vld [vmem:[#allocation5 + $0x338] sm:$0xff]
    %v164 = vld [vmem:[#allocation5 + $0x340] sm:$0xff]
    %v165 = vld [vmem:[#allocation5 + $0x348] sm:$0xff]
    %v166 = vld [vmem:[#allocation5 + $0x350] sm:$0xff]
    %v167 = vld [vmem:[#allocation5 + $0x358] sm:$0xff]
    %v168 = vld [vmem:[#allocation5 + $0x360] sm:$0xff]
    %v169 = vld [vmem:[#allocation5 + $0x368] sm:$0xff]
    %v170 = vld [vmem:[#allocation5 + $0x370] sm:$0xff]
    %v171 = vld [vmem:[#allocation5 + $0x378] sm:$0xff]
    %v172 = vld [vmem:[#allocation5 + $0x380] sm:$0xff]
    %v173 = vld [vmem:[#allocation5 + $0x388] sm:$0xff]
    %v174 = vld [vmem:[#allocation5 + $0x390] sm:$0xff]
    %v175 = vld [vmem:[#allocation5 + $0x398] sm:$0xff]
    %v176 = vld [vmem:[#allocation5 + $0x3a0] sm:$0xff]
    %v177 = vld [vmem:[#allocation5 + $0x3a8] sm:$0xff]
    %v178 = vld [vmem:[#allocation5 + $0x3b0] sm:$0xff]
    %v179 = vld [vmem:[#allocation5 + $0x3b8] sm:$0xff]
    %v180 = vld [vmem:[#allocation5 + $0x3c0] sm:$0xff]
    %v181 = vld [vmem:[#allocation5 + $0x3c8] sm:$0xff]
    %v182 = vld [vmem:[#allocation5 + $0x3d0] sm:$0xff]
    %v183 = vld [vmem:[#allocation5 + $0x3d8] sm:$0xff]
    %v184 = vld [vmem:[#allocation5 + $0x3e0] sm:$0xff]
    %v185 = vld [vmem:[#allocation5 + $0x3e8] sm:$0xff]
    %v186 = vld [vmem:[#allocation5 + $0x3f0] sm:$0xff]
    %v187 = vld [vmem:[#allocation5 + $0x3f8] sm:$0xff]
    %v188 = vld [vmem:[#allocation7] sm:$0xf]
    %v189 = vld [vmem:[#allocation7 + $0x4] sm:$0xf]
    %v190 = vld [vmem:[#allocation7 + $0x8] sm:$0xf]
    %v191 = vld [vmem:[#allocation7 + $0xc] sm:$0xf]
    %v192 = vld [vmem:[#allocation7 + $0x10] sm:$0xf]
    %v193 = vld [vmem:[#allocation7 + $0x14] sm:$0xf]
    %v194 = vld [vmem:[#allocation7 + $0x18] sm:$0xf]
    %v195 = vld [vmem:[#allocation7 + $0x1c] sm:$0xf]
    %v196 = vld [vmem:[#allocation7 + $0x20] sm:$0xf]
    %v197 = vld [vmem:[#allocation7 + $0x24] sm:$0xf]
    %v198 = vld [vmem:[#allocation7 + $0x28] sm:$0xf]
    %v199 = vld [vmem:[#allocation7 + $0x2c] sm:$0xf]
    %v200 = vld [vmem:[#allocation7 + $0x30] sm:$0xf]
    %v201 = vld [vmem:[#allocation7 + $0x34] sm:$0xf]
    %v202 = vld [vmem:[#allocation7 + $0x38] sm:$0xf]
    %v203 = vld [vmem:[#allocation7 + $0x3c] sm:$0xf]
    %v204 = vld [vmem:[#allocation7 + $0x40] sm:$0xf]
    %v205 = vld [vmem:[#allocation7 + $0x44] sm:$0xf]
    %v206 = vld [vmem:[#allocation7 + $0x48] sm:$0xf]
    %v207 = vld [vmem:[#allocation7 + $0x4c] sm:$0xf]
    %v208 = vld [vmem:[#allocation7 + $0x50] sm:$0xf]
    %v209 = vld [vmem:[#allocation7 + $0x54] sm:$0xf]
    %v210 = vld [vmem:[#allocation7 + $0x58] sm:$0xf]
    %v211 = vld [vmem:[#allocation7 + $0x5c] sm:$0xf]
    %v212 = vld [vmem:[#allocation7 + $0x60] sm:$0xf]
    %v213 = vld [vmem:[#allocation7 + $0x64] sm:$0xf]
    %v214 = vld [vmem:[#allocation7 + $0x68] sm:$0xf]
    %v215 = vld [vmem:[#allocation7 + $0x6c] sm:$0xf]
    %v216 = vld [vmem:[#allocation7 + $0x70] sm:$0xf]
    %v217 = vld [vmem:[#allocation7 + $0x74] sm:$0xf]
    %v218 = vld [vmem:[#allocation7 + $0x78] sm:$0xf]
    %v219 = vld [vmem:[#allocation7 + $0x7c] sm:$0xf]
    %v220 = vld [vmem:[#allocation7 + $0x80] sm:$0xf]
    %v221 = vld [vmem:[#allocation7 + $0x84] sm:$0xf]
    %v222 = vld [vmem:[#allocation7 + $0x88] sm:$0xf]
    %v223 = vld [vmem:[#allocation7 + $0x8c] sm:$0xf]
    %v224 = vld [vmem:[#allocation7 + $0x90] sm:$0xf]
    %v225 = vld [vmem:[#allocation7 + $0x94] sm:$0xf]
    %v226 = vld [vmem:[#allocation7 + $0x98] sm:$0xf]
    %v227 = vld [vmem:[#allocation7 + $0x9c] sm:$0xf]
    %v228 = vld [vmem:[#allocation7 + $0xa0] sm:$0xf]
    %v229 = vld [vmem:[#allocation7 + $0xa4] sm:$0xf]
    %v230 = vld [vmem:[#allocation7 + $0xa8] sm:$0xf]
    %v231 = vld [vmem:[#allocation7 + $0xac] sm:$0xf]
    %v232 = vld [vmem:[#allocation7 + $0xb0] sm:$0xf]
    %v233 = vld [vmem:[#allocation7 + $0xb4] sm:$0xf]
    %v234 = vld [vmem:[#allocation7 + $0xb8] sm:$0xf]
    %v235 = vld [vmem:[#allocation7 + $0xbc] sm:$0xf]
    %v236 = vld [vmem:[#allocation7 + $0xc0] sm:$0xf]
    %v237 = vld [vmem:[#allocation7 + $0xc4] sm:$0xf]
    %v238 = vld [vmem:[#allocation7 + $0xc8] sm:$0xf]
    %v239 = vld [vmem:[#allocation7 + $0xcc] sm:$0xf]
    %v240 = vld [vmem:[#allocation7 + $0xd0] sm:$0xf]
    %v241 = vld [vmem:[#allocation7 + $0xd4] sm:$0xf]
    %v242 = vld [vmem:[#allocation7 + $0xd8] sm:$0xf]
    %v243 = vld [vmem:[#allocation7 + $0xdc] sm:$0xf]
    %v244 = vld [vmem:[#allocation7 + $0xe0] sm:$0xf]
    %v245 = vld [vmem:[#allocation7 + $0xe4] sm:$0xf]
    %v246 = vld [vmem:[#allocation7 + $0xe8] sm:$0xf]
    %v247 = vld [vmem:[#allocation7 + $0xec] sm:$0xf]
    %v248 = vld [vmem:[#allocation7 + $0xf0] sm:$0xf]
    %v249 = vld [vmem:[#allocation7 + $0xf4] sm:$0xf]
    %v250 = vld [vmem:[#allocation7 + $0xf8] sm:$0xf]
    %v251 = vld [vmem:[#allocation7 + $0xfc] sm:$0xf]
    %v252 = vld [vmem:[#allocation2] sm:$0xff]
    %v253 = vld [vmem:[#allocation2 + $0x8] sm:$0xff]
    %v254 = vld [vmem:[#allocation2 + $0x10] sm:$0xff]
    %v255 = vld [vmem:[#allocation2 + $0x18] sm:$0xff]
    %v256 = vld [vmem:[#allocation2 + $0x20] sm:$0xff]
    %v257 = vld [vmem:[#allocation2 + $0x28] sm:$0xff]
    %v258 = vld [vmem:[#allocation2 + $0x30] sm:$0xff]
    %v259 = vld [vmem:[#allocation2 + $0x38] sm:$0xff]
    %v260 = vld [vmem:[#allocation2 + $0x40] sm:$0xff]
    %v261 = vld [vmem:[#allocation2 + $0x48] sm:$0xff]
    %v262 = vld [vmem:[#allocation2 + $0x50] sm:$0xff]
    %v263 = vld [vmem:[#allocation2 + $0x58] sm:$0xff]
    %v264 = vld [vmem:[#allocation2 + $0x60] sm:$0xff]
    %v265 = vld [vmem:[#allocation2 + $0x68] sm:$0xff]
    %v266 = vld [vmem:[#allocation2 + $0x70] sm:$0xff]
    %v267 = vld [vmem:[#allocation2 + $0x78] sm:$0xff]
    %v268 = vld [vmem:[#allocation2 + $0x80] sm:$0xff]
    %v269 = vld [vmem:[#allocation2 + $0x88] sm:$0xff]
    %v270 = vld [vmem:[#allocation2 + $0x90] sm:$0xff]
    %v271 = vld [vmem:[#allocation2 + $0x98] sm:$0xff]
    %v272 = vld [vmem:[#allocation2 + $0xa0] sm:$0xff]
    %v273 = vld [vmem:[#allocation2 + $0xa8] sm:$0xff]
    %v274 = vld [vmem:[#allocation2 + $0xb0] sm:$0xff]
    %v275 = vld [vmem:[#allocation2 + $0xb8] sm:$0xff]
    %v276 = vld [vmem:[#allocation2 + $0xc0] sm:$0xff]
    %v277 = vld [vmem:[#allocation2 + $0xc8] sm:$0xff]
    %v278 = vld [vmem:[#allocation2 + $0xd0] sm:$0xff]
    %v279 = vld [vmem:[#allocation2 + $0xd8] sm:$0xff]
    %v280 = vld [vmem:[#allocation2 + $0xe0] sm:$0xff]
    %v281 = vld [vmem:[#allocation2 + $0xe8] sm:$0xff]
    %v282 = vld [vmem:[#allocation2 + $0xf0] sm:$0xff]
    %v283 = vld [vmem:[#allocation2 + $0xf8] sm:$0xff]
    %v284 = vld [vmem:[#allocation2 + $0x100] sm:$0xff]
    %v285 = vld [vmem:[#allocation2 + $0x108] sm:$0xff]
    %v286 = vld [vmem:[#allocation2 + $0x110] sm:$0xff]
    %v287 = vld [vmem:[#allocation2 + $0x118] sm:$0xff]
    %v288 = vld [vmem:[#allocation2 + $0x120] sm:$0xff]
    %v289 = vld [vmem:[#allocation2 + $0x128] sm:$0xff]
    %v290 = vld [vmem:[#allocation2 + $0x130] sm:$0xff]
    %v291 = vld [vmem:[#allocation2 + $0x138] sm:$0xff]
    %v292 = vld [vmem:[#allocation2 + $0x140] sm:$0xff]
    %v293 = vld [vmem:[#allocation2 + $0x148] sm:$0xff]
    %v294 = vld [vmem:[#allocation2 + $0x150] sm:$0xff]
    %v295 = vld [vmem:[#allocation2 + $0x158] sm:$0xff]
    %v296 = vld [vmem:[#allocation2 + $0x160] sm:$0xff]
    %v297 = vld [vmem:[#allocation2 + $0x168] sm:$0xff]
    %v298 = vld [vmem:[#allocation2 + $0x170] sm:$0xff]
    %v299 = vld [vmem:[#allocation2 + $0x178] sm:$0xff]
    %v300 = vld [vmem:[#allocation2 + $0x180] sm:$0xff]
    %v301 = vld [vmem:[#allocation2 + $0x188] sm:$0xff]
    %v302 = vld [vmem:[#allocation2 + $0x190] sm:$0xff]
    %v303 = vld [vmem:[#allocation2 + $0x198] sm:$0xff]
    %v304 = vld [vmem:[#allocation2 + $0x1a0] sm:$0xff]
    %v305 = vld [vmem:[#allocation2 + $0x1a8] sm:$0xff]
    %v306 = vld [vmem:[#allocation2 + $0x1b0] sm:$0xff]
    %v307 = vld [vmem:[#allocation2 + $0x1b8] sm:$0xff]
    %v308 = vld [vmem:[#allocation2 + $0x1c0] sm:$0xff]
    %v309 = vld [vmem:[#allocation2 + $0x1c8] sm:$0xff]
    %v310 = vld [vmem:[#allocation2 + $0x1d0] sm:$0xff]
    %v311 = vld [vmem:[#allocation2 + $0x1d8] sm:$0xff]
    %v312 = vld [vmem:[#allocation2 + $0x1e0] sm:$0xff]
    %v313 = vld [vmem:[#allocation2 + $0x1e8] sm:$0xff]
    %v314 = vld [vmem:[#allocation2 + $0x1f0] sm:$0xff]
    %v315 = vld [vmem:[#allocation2 + $0x1f8] sm:$0xff]
    %v316 = vld [vmem:[%s3] sm:$0x1]
    %v318 = vlaneseq
    %v319 = vshrl.u32 %v318, 7
    %v320 = vsub.s32 0, %v319
    %v321 = vrot.slane %v316, %v320
    %v451 = vunpack.c.l.b16 %v60
    %v452 = vunpack.c.h.b16 %v60
    %v453 = vunpack.c.l.b16 %v61
    %v454 = vunpack.c.h.b16 %v61
    %v455 = vunpack.c.l.b16 %v62
    %v456 = vunpack.c.h.b16 %v62
    %v457 = vunpack.c.l.b16 %v63
    %v458 = vunpack.c.h.b16 %v63
    %v459 = vunpack.c.l.b16 %v64
    %v460 = vunpack.c.h.b16 %v64
    %v461 = vunpack.c.l.b16 %v65
    %v462 = vunpack.c.h.b16 %v65
    %v463 = vunpack.c.l.b16 %v66
    %v464 = vunpack.c.h.b16 %v66
    %v465 = vunpack.c.l.b16 %v67
    %v466 = vunpack.c.h.b16 %v67
    %v467 = vunpack.c.l.b16 %v68
    %v468 = vunpack.c.h.b16 %v68
    %v469 = vunpack.c.l.b16 %v69
    %v470 = vunpack.c.h.b16 %v69
    %v471 = vunpack.c.l.b16 %v70
    %v472 = vunpack.c.h.b16 %v70
    %v473 = vunpack.c.l.b16 %v71
    %v474 = vunpack.c.h.b16 %v71
    %v475 = vunpack.c.l.b16 %v72
    %v476 = vunpack.c.h.b16 %v72
    %v477 = vunpack.c.l.b16 %v73
    %v478 = vunpack.c.h.b16 %v73
    %v479 = vunpack.c.l.b16 %v74
    %v480 = vunpack.c.h.b16 %v74
    %v481 = vunpack.c.l.b16 %v75
    %v482 = vunpack.c.h.b16 %v75
    %v483 = vunpack.c.l.b16 %v76
    %v484 = vunpack.c.h.b16 %v76
    %v485 = vunpack.c.l.b16 %v77
    %v486 = vunpack.c.h.b16 %v77
    %v487 = vunpack.c.l.b16 %v78
    %v488 = vunpack.c.h.b16 %v78
    %v489 = vunpack.c.l.b16 %v79
    %v490 = vunpack.c.h.b16 %v79
    %v491 = vunpack.c.l.b16 %v80
    %v492 = vunpack.c.h.b16 %v80
    %v493 = vunpack.c.l.b16 %v81
    %v494 = vunpack.c.h.b16 %v81
    %v495 = vunpack.c.l.b16 %v82
    %v496 = vunpack.c.h.b16 %v82
    %v497 = vunpack.c.l.b16 %v83
    %v498 = vunpack.c.h.b16 %v83
    %v499 = vunpack.c.l.b16 %v84
    %v500 = vunpack.c.h.b16 %v84
    %v501 = vunpack.c.l.b16 %v85
    %v502 = vunpack.c.h.b16 %v85
    %v503 = vunpack.c.l.b16 %v86
    %v504 = vunpack.c.h.b16 %v86
    %v505 = vunpack.c.l.b16 %v87
    %v506 = vunpack.c.h.b16 %v87
    %v507 = vunpack.c.l.b16 %v88
    %v508 = vunpack.c.h.b16 %v88
    %v509 = vunpack.c.l.b16 %v89
    %v510 = vunpack.c.h.b16 %v89
    %v511 = vunpack.c.l.b16 %v90
    %v512 = vunpack.c.h.b16 %v90
    %v513 = vunpack.c.l.b16 %v91
    %v514 = vunpack.c.h.b16 %v91
    %v515 = vunpack.c.l.b16 %v92
    %v516 = vunpack.c.h.b16 %v92
    %v517 = vunpack.c.l.b16 %v93
    %v518 = vunpack.c.h.b16 %v93
    %v519 = vunpack.c.l.b16 %v94
    %v520 = vunpack.c.h.b16 %v94
    %v521 = vunpack.c.l.b16 %v95
    %v522 = vunpack.c.h.b16 %v95
    %v523 = vunpack.c.l.b16 %v96
    %v524 = vunpack.c.h.b16 %v96
    %v525 = vunpack.c.l.b16 %v97
    %v526 = vunpack.c.h.b16 %v97
    %v527 = vunpack.c.l.b16 %v98
    %v528 = vunpack.c.h.b16 %v98
    %v529 = vunpack.c.l.b16 %v99
    %v530 = vunpack.c.h.b16 %v99
    %v531 = vunpack.c.l.b16 %v100
    %v532 = vunpack.c.h.b16 %v100
    %v533 = vunpack.c.l.b16 %v101
    %v534 = vunpack.c.h.b16 %v101
    %v535 = vunpack.c.l.b16 %v102
    %v536 = vunpack.c.h.b16 %v102
    %v537 = vunpack.c.l.b16 %v103
    %v538 = vunpack.c.h.b16 %v103
    %v539 = vunpack.c.l.b16 %v104
    %v540 = vunpack.c.h.b16 %v104
    %v541 = vunpack.c.l.b16 %v105
    %v542 = vunpack.c.h.b16 %v105
    %v543 = vunpack.c.l.b16 %v106
    %v544 = vunpack.c.h.b16 %v106
    %v545 = vunpack.c.l.b16 %v107
    %v546 = vunpack.c.h.b16 %v107
    %v547 = vunpack.c.l.b16 %v108
    %v548 = vunpack.c.h.b16 %v108
    %v549 = vunpack.c.l.b16 %v109
    %v550 = vunpack.c.h.b16 %v109
    %v551 = vunpack.c.l.b16 %v110
    %v552 = vunpack.c.h.b16 %v110
    %v553 = vunpack.c.l.b16 %v111
    %v554 = vunpack.c.h.b16 %v111
    %v555 = vunpack.c.l.b16 %v112
    %v556 = vunpack.c.h.b16 %v112
    %v557 = vunpack.c.l.b16 %v113
    %v558 = vunpack.c.h.b16 %v113
    %v559 = vunpack.c.l.b16 %v114
    %v560 = vunpack.c.h.b16 %v114
    %v561 = vunpack.c.l.b16 %v115
    %v562 = vunpack.c.h.b16 %v115
    %v563 = vunpack.c.l.b16 %v116
    %v564 = vunpack.c.h.b16 %v116
    %v565 = vunpack.c.l.b16 %v117
    %v566 = vunpack.c.h.b16 %v117
    %v567 = vunpack.c.l.b16 %v118
    %v568 = vunpack.c.h.b16 %v118
    %v569 = vunpack.c.l.b16 %v119
    %v570 = vunpack.c.h.b16 %v119
    %v571 = vunpack.c.l.b16 %v120
    %v572 = vunpack.c.h.b16 %v120
    %v573 = vunpack.c.l.b16 %v121
    %v574 = vunpack.c.h.b16 %v121
    %v575 = vunpack.c.l.b16 %v122
    %v576 = vunpack.c.h.b16 %v122
    %v577 = vunpack.c.l.b16 %v123
    %v578 = vunpack.c.h.b16 %v123
    %v579 = vunpack.c.l.b16 %v124
    %v580 = vunpack.c.h.b16 %v124
    %v581 = vunpack.c.l.b16 %v125
    %v582 = vunpack.c.h.b16 %v125
    %v583 = vunpack.c.l.b16 %v126
    %v584 = vunpack.c.h.b16 %v126
    %v585 = vunpack.c.l.b16 %v127
    %v586 = vunpack.c.h.b16 %v127
    %v587 = vunpack.c.l.b16 %v128
    %v588 = vunpack.c.h.b16 %v128
    %v589 = vunpack.c.l.b16 %v129
    %v590 = vunpack.c.h.b16 %v129
    %v591 = vunpack.c.l.b16 %v130
    %v592 = vunpack.c.h.b16 %v130
    %v593 = vunpack.c.l.b16 %v131
    %v594 = vunpack.c.h.b16 %v131
    %v595 = vunpack.c.l.b16 %v132
    %v596 = vunpack.c.h.b16 %v132
    %v597 = vunpack.c.l.b16 %v133
    %v598 = vunpack.c.h.b16 %v133
    %v599 = vunpack.c.l.b16 %v134
    %v600 = vunpack.c.h.b16 %v134
    %v601 = vunpack.c.l.b16 %v135
    %v602 = vunpack.c.h.b16 %v135
    %v603 = vunpack.c.l.b16 %v136
    %v604 = vunpack.c.h.b16 %v136
    %v605 = vunpack.c.l.b16 %v137
    %v606 = vunpack.c.h.b16 %v137
    %v607 = vunpack.c.l.b16 %v138
    %v608 = vunpack.c.h.b16 %v138
    %v609 = vunpack.c.l.b16 %v139
    %v610 = vunpack.c.h.b16 %v139
    %v611 = vunpack.c.l.b16 %v140
    %v612 = vunpack.c.h.b16 %v140
    %v613 = vunpack.c.l.b16 %v141
    %v614 = vunpack.c.h.b16 %v141
    %v615 = vunpack.c.l.b16 %v142
    %v616 = vunpack.c.h.b16 %v142
    %v617 = vunpack.c.l.b16 %v143
    %v618 = vunpack.c.h.b16 %v143
    %v619 = vunpack.c.l.b16 %v144
    %v620 = vunpack.c.h.b16 %v144
    %v621 = vunpack.c.l.b16 %v145
    %v622 = vunpack.c.h.b16 %v145
    %v623 = vunpack.c.l.b16 %v146
    %v624 = vunpack.c.h.b16 %v146
    %v625 = vunpack.c.l.b16 %v147
    %v626 = vunpack.c.h.b16 %v147
    %v627 = vunpack.c.l.b16 %v148
    %v628 = vunpack.c.h.b16 %v148
    %v629 = vunpack.c.l.b16 %v149
    %v630 = vunpack.c.h.b16 %v149
    %v631 = vunpack.c.l.b16 %v150
    %v632 = vunpack.c.h.b16 %v150
    %v633 = vunpack.c.l.b16 %v151
    %v634 = vunpack.c.h.b16 %v151
    %v635 = vunpack.c.l.b16 %v152
    %v636 = vunpack.c.h.b16 %v152
    %v637 = vunpack.c.l.b16 %v153
    %v638 = vunpack.c.h.b16 %v153
    %v639 = vunpack.c.l.b16 %v154
    %v640 = vunpack.c.h.b16 %v154
    %v641 = vunpack.c.l.b16 %v155
    %v642 = vunpack.c.h.b16 %v155
    %v643 = vunpack.c.l.b16 %v156
    %v644 = vunpack.c.h.b16 %v156
    %v645 = vunpack.c.l.b16 %v157
    %v646 = vunpack.c.h.b16 %v157
    %v647 = vunpack.c.l.b16 %v158
    %v648 = vunpack.c.h.b16 %v158
    %v649 = vunpack.c.l.b16 %v159
    %v650 = vunpack.c.h.b16 %v159
    %v651 = vunpack.c.l.b16 %v160
    %v652 = vunpack.c.h.b16 %v160
    %v653 = vunpack.c.l.b16 %v161
    %v654 = vunpack.c.h.b16 %v161
    %v655 = vunpack.c.l.b16 %v162
    %v656 = vunpack.c.h.b16 %v162
    %v657 = vunpack.c.l.b16 %v163
    %v658 = vunpack.c.h.b16 %v163
    %v659 = vunpack.c.l.b16 %v164
    %v660 = vunpack.c.h.b16 %v164
    %v661 = vunpack.c.l.b16 %v165
    %v662 = vunpack.c.h.b16 %v165
    %v663 = vunpack.c.l.b16 %v166
    %v664 = vunpack.c.h.b16 %v166
    %v665 = vunpack.c.l.b16 %v167
    %v666 = vunpack.c.h.b16 %v167
    %v667 = vunpack.c.l.b16 %v168
    %v668 = vunpack.c.h.b16 %v168
    %v669 = vunpack.c.l.b16 %v169
    %v670 = vunpack.c.h.b16 %v169
    %v671 = vunpack.c.l.b16 %v170
    %v672 = vunpack.c.h.b16 %v170
    %v673 = vunpack.c.l.b16 %v171
    %v674 = vunpack.c.h.b16 %v171
    %v675 = vunpack.c.l.b16 %v172
    %v676 = vunpack.c.h.b16 %v172
    %v677 = vunpack.c.l.b16 %v173
    %v678 = vunpack.c.h.b16 %v173
    %v679 = vunpack.c.l.b16 %v174
    %v680 = vunpack.c.h.b16 %v174
    %v681 = vunpack.c.l.b16 %v175
    %v682 = vunpack.c.h.b16 %v175
    %v683 = vunpack.c.l.b16 %v176
    %v684 = vunpack.c.h.b16 %v176
    %v685 = vunpack.c.l.b16 %v177
    %v686 = vunpack.c.h.b16 %v177
    %v687 = vunpack.c.l.b16 %v178
    %v688 = vunpack.c.h.b16 %v178
    %v689 = vunpack.c.l.b16 %v179
    %v690 = vunpack.c.h.b16 %v179
    %v691 = vunpack.c.l.b16 %v180
    %v692 = vunpack.c.h.b16 %v180
    %v693 = vunpack.c.l.b16 %v181
    %v694 = vunpack.c.h.b16 %v181
    %v695 = vunpack.c.l.b16 %v182
    %v696 = vunpack.c.h.b16 %v182
    %v697 = vunpack.c.l.b16 %v183
    %v698 = vunpack.c.h.b16 %v183
    %v699 = vunpack.c.l.b16 %v184
    %v700 = vunpack.c.h.b16 %v184
    %v701 = vunpack.c.l.b16 %v185
    %v702 = vunpack.c.h.b16 %v185
    %v703 = vunpack.c.l.b16 %v186
    %v704 = vunpack.c.h.b16 %v186
    %v705 = vunpack.c.l.b16 %v187
    %v706 = vunpack.c.h.b16 %v187
    %v707 = vpack.c.b16 %v455, %v451
    %v708 = vpack.c.b16 %v456, %v452
    %v709 = vpack.c.b16 %v457, %v453
    %v710 = vpack.c.b16 %v458, %v454
    %v711 = vpack.c.b16 %v463, %v459
    %v712 = vpack.c.b16 %v464, %v460
    %v713 = vpack.c.b16 %v465, %v461
    %v714 = vpack.c.b16 %v466, %v462
    %v715 = vpack.c.b16 %v471, %v467
    %v716 = vpack.c.b16 %v472, %v468
    %v717 = vpack.c.b16 %v473, %v469
    %v718 = vpack.c.b16 %v474, %v470
    %v719 = vpack.c.b16 %v479, %v475
    %v720 = vpack.c.b16 %v480, %v476
    %v721 = vpack.c.b16 %v481, %v477
    %v722 = vpack.c.b16 %v482, %v478
    %v723 = vpack.c.b16 %v487, %v483
    %v724 = vpack.c.b16 %v488, %v484
    %v725 = vpack.c.b16 %v489, %v485
    %v726 = vpack.c.b16 %v490, %v486
    %v727 = vpack.c.b16 %v495, %v491
    %v728 = vpack.c.b16 %v496, %v492
    %v729 = vpack.c.b16 %v497, %v493
    %v730 = vpack.c.b16 %v498, %v494
    %v731 = vpack.c.b16 %v503, %v499
    %v732 = vpack.c.b16 %v504, %v500
    %v733 = vpack.c.b16 %v505, %v501
    %v734 = vpack.c.b16 %v506, %v502
    %v735 = vpack.c.b16 %v511, %v507
    %v736 = vpack.c.b16 %v512, %v508
    %v737 = vpack.c.b16 %v513, %v509
    %v738 = vpack.c.b16 %v514, %v510
    %v739 = vpack.c.b16 %v519, %v515
    %v740 = vpack.c.b16 %v520, %v516
    %v741 = vpack.c.b16 %v521, %v517
    %v742 = vpack.c.b16 %v522, %v518
    %v743 = vpack.c.b16 %v527, %v523
    %v744 = vpack.c.b16 %v528, %v524
    %v745 = vpack.c.b16 %v529, %v525
    %v746 = vpack.c.b16 %v530, %v526
    %v747 = vpack.c.b16 %v535, %v531
    %v748 = vpack.c.b16 %v536, %v532
    %v749 = vpack.c.b16 %v537, %v533
    %v750 = vpack.c.b16 %v538, %v534
    %v751 = vpack.c.b16 %v543, %v539
    %v752 = vpack.c.b16 %v544, %v540
    %v753 = vpack.c.b16 %v545, %v541
    %v754 = vpack.c.b16 %v546, %v542
    %v755 = vpack.c.b16 %v551, %v547
    %v756 = vpack.c.b16 %v552, %v548
    %v757 = vpack.c.b16 %v553, %v549
    %v758 = vpack.c.b16 %v554, %v550
    %v759 = vpack.c.b16 %v559, %v555
    %v760 = vpack.c.b16 %v560, %v556
    %v761 = vpack.c.b16 %v561, %v557
    %v762 = vpack.c.b16 %v562, %v558
    %v763 = vpack.c.b16 %v567, %v563
    %v764 = vpack.c.b16 %v568, %v564
    %v765 = vpack.c.b16 %v569, %v565
    %v766 = vpack.c.b16 %v570, %v566
    %v767 = vpack.c.b16 %v575, %v571
    %v768 = vpack.c.b16 %v576, %v572
    %v769 = vpack.c.b16 %v577, %v573
    %v770 = vpack.c.b16 %v578, %v574
    %v771 = vpack.c.b16 %v583, %v579
    %v772 = vpack.c.b16 %v584, %v580
    %v773 = vpack.c.b16 %v585, %v581
    %v774 = vpack.c.b16 %v586, %v582
    %v775 = vpack.c.b16 %v591, %v587
    %v776 = vpack.c.b16 %v592, %v588
    %v777 = vpack.c.b16 %v593, %v589
    %v778 = vpack.c.b16 %v594, %v590
    %v779 = vpack.c.b16 %v599, %v595
    %v780 = vpack.c.b16 %v600, %v596
    %v781 = vpack.c.b16 %v601, %v597
    %v782 = vpack.c.b16 %v602, %v598
    %v783 = vpack.c.b16 %v607, %v603
    %v784 = vpack.c.b16 %v608, %v604
    %v785 = vpack.c.b16 %v609, %v605
    %v786 = vpack.c.b16 %v610, %v606
    %v787 = vpack.c.b16 %v615, %v611
    %v788 = vpack.c.b16 %v616, %v612
    %v789 = vpack.c.b16 %v617, %v613
    %v790 = vpack.c.b16 %v618, %v614
    %v791 = vpack.c.b16 %v623, %v619
    %v792 = vpack.c.b16 %v624, %v620
    %v793 = vpack.c.b16 %v625, %v621
    %v794 = vpack.c.b16 %v626, %v622
    %v795 = vpack.c.b16 %v631, %v627
    %v796 = vpack.c.b16 %v632, %v628
    %v797 = vpack.c.b16 %v633, %v629
    %v798 = vpack.c.b16 %v634, %v630
    %v799 = vpack.c.b16 %v639, %v635
    %v800 = vpack.c.b16 %v640, %v636
    %v801 = vpack.c.b16 %v641, %v637
    %v802 = vpack.c.b16 %v642, %v638
    %v803 = vpack.c.b16 %v647, %v643
    %v804 = vpack.c.b16 %v648, %v644
    %v805 = vpack.c.b16 %v649, %v645
    %v806 = vpack.c.b16 %v650, %v646
    %v807 = vpack.c.b16 %v655, %v651
    %v808 = vpack.c.b16 %v656, %v652
    %v809 = vpack.c.b16 %v657, %v653
    %v810 = vpack.c.b16 %v658, %v654
    %v811 = vpack.c.b16 %v663, %v659
    %v812 = vpack.c.b16 %v664, %v660
    %v813 = vpack.c.b16 %v665, %v661
    %v814 = vpack.c.b16 %v666, %v662
    %v815 = vpack.c.b16 %v671, %v667
    %v816 = vpack.c.b16 %v672, %v668
    %v817 = vpack.c.b16 %v673, %v669
    %v818 = vpack.c.b16 %v674, %v670
    %v819 = vpack.c.b16 %v679, %v675
    %v820 = vpack.c.b16 %v680, %v676
    %v821 = vpack.c.b16 %v681, %v677
    %v822 = vpack.c.b16 %v682, %v678
    %v823 = vpack.c.b16 %v687, %v683
    %v824 = vpack.c.b16 %v688, %v684
    %v825 = vpack.c.b16 %v689, %v685
    %v826 = vpack.c.b16 %v690, %v686
    %v827 = vpack.c.b16 %v695, %v691
    %v828 = vpack.c.b16 %v696, %v692
    %v829 = vpack.c.b16 %v697, %v693
    %v830 = vpack.c.b16 %v698, %v694
    %v831 = vpack.c.b16 %v703, %v699
    %v832 = vpack.c.b16 %v704, %v700
    %v833 = vpack.c.b16 %v705, %v701
    %v834 = vpack.c.b16 %v706, %v702
    %v1027 = vunpack.c.l.b16 %v188
    %v1028 = vunpack.c.l.b16 %v189
    %v1029 = vunpack.c.l.b16 %v190
    %v1030 = vunpack.c.l.b16 %v191
    %v1031 = vunpack.c.l.b16 %v192
    %v1032 = vunpack.c.l.b16 %v193
    %v1033 = vunpack.c.l.b16 %v194
    %v1034 = vunpack.c.l.b16 %v195
    %v1035 = vunpack.c.l.b16 %v196
    %v1036 = vunpack.c.l.b16 %v197
    %v1037 = vunpack.c.l.b16 %v198
    %v1038 = vunpack.c.l.b16 %v199
    %v1039 = vunpack.c.l.b16 %v200
    %v1040 = vunpack.c.l.b16 %v201
    %v1041 = vunpack.c.l.b16 %v202
    %v1042 = vunpack.c.l.b16 %v203
    %v1043 = vunpack.c.l.b16 %v204
    %v1044 = vunpack.c.l.b16 %v205
    %v1045 = vunpack.c.l.b16 %v206
    %v1046 = vunpack.c.l.b16 %v207
    %v1047 = vunpack.c.l.b16 %v208
    %v1048 = vunpack.c.l.b16 %v209
    %v1049 = vunpack.c.l.b16 %v210
    %v1050 = vunpack.c.l.b16 %v211
    %v1051 = vunpack.c.l.b16 %v212
    %v1052 = vunpack.c.l.b16 %v213
    %v1053 = vunpack.c.l.b16 %v214
    %v1054 = vunpack.c.l.b16 %v215
    %v1055 = vunpack.c.l.b16 %v216
    %v1056 = vunpack.c.l.b16 %v217
    %v1057 = vunpack.c.l.b16 %v218
    %v1058 = vunpack.c.l.b16 %v219
    %v1059 = vunpack.c.l.b16 %v220
    %v1060 = vunpack.c.l.b16 %v221
    %v1061 = vunpack.c.l.b16 %v222
    %v1062 = vunpack.c.l.b16 %v223
    %v1063 = vunpack.c.l.b16 %v224
    %v1064 = vunpack.c.l.b16 %v225
    %v1065 = vunpack.c.l.b16 %v226
    %v1066 = vunpack.c.l.b16 %v227
    %v1067 = vunpack.c.l.b16 %v228
    %v1068 = vunpack.c.l.b16 %v229
    %v1069 = vunpack.c.l.b16 %v230
    %v1070 = vunpack.c.l.b16 %v231
    %v1071 = vunpack.c.l.b16 %v232
    %v1072 = vunpack.c.l.b16 %v233
    %v1073 = vunpack.c.l.b16 %v234
    %v1074 = vunpack.c.l.b16 %v235
    %v1075 = vunpack.c.l.b16 %v236
    %v1076 = vunpack.c.l.b16 %v237
    %v1077 = vunpack.c.l.b16 %v238
    %v1078 = vunpack.c.l.b16 %v239
    %v1079 = vunpack.c.l.b16 %v240
    %v1080 = vunpack.c.l.b16 %v241
    %v1081 = vunpack.c.l.b16 %v242
    %v1082 = vunpack.c.l.b16 %v243
    %v1083 = vunpack.c.l.b16 %v244
    %v1084 = vunpack.c.l.b16 %v245
    %v1085 = vunpack.c.l.b16 %v246
    %v1086 = vunpack.c.l.b16 %v247
    %v1087 = vunpack.c.l.b16 %v248
    %v1088 = vunpack.c.l.b16 %v249
    %v1089 = vunpack.c.l.b16 %v250
    %v1090 = vunpack.c.l.b16 %v251
    %v1091 = vpack.c.b16 %v1028, %v1027
    %v1092 = vpack.c.b16 %v1030, %v1029
    %v1093 = vpack.c.b16 %v1032, %v1031
    %v1094 = vpack.c.b16 %v1034, %v1033
    %v1095 = vpack.c.b16 %v1036, %v1035
    %v1096 = vpack.c.b16 %v1038, %v1037
    %v1097 = vpack.c.b16 %v1040, %v1039
    %v1098 = vpack.c.b16 %v1042, %v1041
    %v1099 = vpack.c.b16 %v1044, %v1043
    %v1100 = vpack.c.b16 %v1046, %v1045
    %v1101 = vpack.c.b16 %v1048, %v1047
    %v1102 = vpack.c.b16 %v1050, %v1049
    %v1103 = vpack.c.b16 %v1052, %v1051
    %v1104 = vpack.c.b16 %v1054, %v1053
    %v1105 = vpack.c.b16 %v1056, %v1055
    %v1106 = vpack.c.b16 %v1058, %v1057
    %v1107 = vpack.c.b16 %v1060, %v1059
    %v1108 = vpack.c.b16 %v1062, %v1061
    %v1109 = vpack.c.b16 %v1064, %v1063
    %v1110 = vpack.c.b16 %v1066, %v1065
    %v1111 = vpack.c.b16 %v1068, %v1067
    %v1112 = vpack.c.b16 %v1070, %v1069
    %v1113 = vpack.c.b16 %v1072, %v1071
    %v1114 = vpack.c.b16 %v1074, %v1073
    %v1115 = vpack.c.b16 %v1076, %v1075
    %v1116 = vpack.c.b16 %v1078, %v1077
    %v1117 = vpack.c.b16 %v1080, %v1079
    %v1118 = vpack.c.b16 %v1082, %v1081
    %v1119 = vpack.c.b16 %v1084, %v1083
    %v1120 = vpack.c.b16 %v1086, %v1085
    %v1121 = vpack.c.b16 %v1088, %v1087
    %v1122 = vpack.c.b16 %v1090, %v1089
    %1155 = vmatprep.subr.bf16.mxu0 0
    %1156 = vmatpush1.bf16.msra.mxu0 %v1091
    %1157 = vmatprep.subr.bf16.mxu0 0
    %1158 = vmatpush1.bf16.msra.mxu0 %v1092
    %1159 = vmatprep.subr.bf16.mxu0 0
    %1160 = vmatpush1.bf16.msra.mxu0 %v1093
    %1161 = vmatprep.subr.bf16.mxu0 0
    %1162 = vmatpush1.bf16.msra.mxu0 %v1094
    %1163 = vmatprep.subr.bf16.mxu0 0
    %1164 = vmatpush1.bf16.msra.mxu0 %v1095
    %1165 = vmatprep.subr.bf16.mxu0 0
    %1166 = vmatpush1.bf16.msra.mxu0 %v1096
    %1167 = vmatprep.subr.bf16.mxu0 0
    %1168 = vmatpush1.bf16.msra.mxu0 %v1097
    %1169 = vmatprep.subr.bf16.mxu0 0
    %1170 = vmatpush1.bf16.msra.mxu0 %v1098
    %1171 = vmatprep.subr.bf16.mxu0 0
    %1172 = vmatpush1.bf16.msra.mxu0 %v1099
    %1173 = vmatprep.subr.bf16.mxu0 0
    %1174 = vmatpush1.bf16.msra.mxu0 %v1100
    %1175 = vmatprep.subr.bf16.mxu0 0
    %1176 = vmatpush1.bf16.msra.mxu0 %v1101
    %1177 = vmatprep.subr.bf16.mxu0 0
    %1178 = vmatpush1.bf16.msra.mxu0 %v1102
    %1179 = vmatprep.subr.bf16.mxu0 0
    %1180 = vmatpush1.bf16.msra.mxu0 %v1103
    %1181 = vmatprep.subr.bf16.mxu0 0
    %1182 = vmatpush1.bf16.msra.mxu0 %v1104
    %1183 = vmatprep.subr.bf16.mxu0 0
    %1184 = vmatpush1.bf16.msra.mxu0 %v1105
    %1185 = vmatprep.subr.bf16.mxu0 0
    %1186 = vmatpush1.bf16.msra.mxu0 %v1106
    %1187 = vmatprep.mubr.bf16.mxu0 %v708
    %1188 = vmatmul.mubr.bf16.gmra.mrb[0].mxu0 %v707
    %v1189 = vpop.f32.mrb[0].mxu0
    %v1190 = vadd.f32 %v321, %v1189
    %v1191 = vpop.f32.mrb[0].mxu0
    %v1192 = vpop.f32.mrb[0].mxu0
    %v1193 = vadd.f32 %v321, %v1192
    %v1194 = vpop.f32.mrb[0].mxu0
    %1195 = vmatprep.mubr.bf16.mxu0 %v712
    %1196 = vmatmul.mubr.bf16.gmra.mrb[0].mxu0 %v711
    %v1197 = vpop.f32.mrb[0].mxu0
    %v1198 = vadd.f32 %v321, %v1197
    %v1199 = vpop.f32.mrb[0].mxu0
    %v1200 = vpop.f32.mrb[0].mxu0
    %v1201 = vadd.f32 %v321, %v1200
    %v1202 = vpop.f32.mrb[0].mxu0
    %1203 = vmatprep.mubr.bf16.mxu0 %v716
    %1204 = vmatmul.mubr.bf16.gmra.mrb[0].mxu0 %v715
    %v1205 = vpop.f32.mrb[0].mxu0
    %v1206 = vadd.f32 %v321, %v1205
    %v1207 = vpop.f32.mrb[0].mxu0
    %v1208 = vpop.f32.mrb[0].mxu0
    %v1209 = vadd.f32 %v321, %v1208
    %v1210 = vpop.f32.mrb[0].mxu0
    %1211 = vmatprep.mubr.bf16.mxu0 %v720
    %1212 = vmatmul.mubr.bf16.gmra.mrb[0].mxu0 %v719
    %v1213 = vpop.f32.mrb[0].mxu0
    %v1214 = vadd.f32 %v321, %v1213
    %v1215 = vpop.f32.mrb[0].mxu0
    %v1216 = vpop.f32.mrb[0].mxu0
    %v1217 = vadd.f32 %v321, %v1216
    %v1218 = vpop.f32.mrb[0].mxu0
    %1219 = vmatprep.mubr.bf16.mxu0 %v724
    %1220 = vmatmul.mubr.bf16.gmra.mrb[0].mxu0 %v723
    %v1221 = vpop.f32.mrb[0].mxu0
    %v1222 = vadd.f32 %v321, %v1221
    %v1223 = vpop.f32.mrb[0].mxu0
    %v1224 = vpop.f32.mrb[0].mxu0
    %v1225 = vadd.f32 %v321, %v1224
    %v1226 = vpop.f32.mrb[0].mxu0
    %1227 = vmatprep.mubr.bf16.mxu0 %v728
    %1228 = vmatmul.mubr.bf16.gmra.mrb[0].mxu0 %v727
    %v1229 = vpop.f32.mrb[0].mxu0
    %v1230 = vadd.f32 %v321, %v1229
    %v1231 = vpop.f32.mrb[0].mxu0
    %v1232 = vpop.f32.mrb[0].mxu0
    %v1233 = vadd.f32 %v321, %v1232
    %v1234 = vpop.f32.mrb[0].mxu0
    %1235 = vmatprep.mubr.bf16.mxu0 %v732
    %1236 = vmatmul.mubr.bf16.gmra.mrb[0].mxu0 %v731
    %v1237 = vpop.f32.mrb[0].mxu0
    %v1238 = vadd.f32 %v321, %v1237
    %v1239 = vpop.f32.mrb[0].mxu0
    %v1240 = vpop.f32.mrb[0].mxu0
    %v1241 = vadd.f32 %v321, %v1240
    %v1242 = vpop.f32.mrb[0].mxu0
    %1243 = vmatprep.mubr.bf16.mxu0 %v736
    %1244 = vmatmul.mubr.bf16.gmra.mrb[0].mxu0 %v735
    %v1245 = vpop.f32.mrb[0].mxu0
    %v1246 = vadd.f32 %v321, %v1245
    %v1247 = vpop.f32.mrb[0].mxu0
    %v1248 = vpop.f32.mrb[0].mxu0
    %v1249 = vadd.f32 %v321, %v1248
    %v1250 = vpop.f32.mrb[0].mxu0
    %1251 = vmatprep.mubr.bf16.mxu0 %v740
    %1252 = vmatmul.mubr.bf16.gmra.mrb[0].mxu0 %v739
    %v1253 = vpop.f32.mrb[0].mxu0
    %v1254 = vadd.f32 %v321, %v1253
    %v1255 = vpop.f32.mrb[0].mxu0
    %v1256 = vpop.f32.mrb[0].mxu0
    %v1257 = vadd.f32 %v321, %v1256
    %v1258 = vpop.f32.mrb[0].mxu0
    %1259 = vmatprep.mubr.bf16.mxu0 %v744
    %1260 = vmatmul.mubr.bf16.gmra.mrb[0].mxu0 %v743
    %v1261 = vpop.f32.mrb[0].mxu0
    %v1262 = vadd.f32 %v321, %v1261
    %v1263 = vpop.f32.mrb[0].mxu0
    %v1264 = vpop.f32.mrb[0].mxu0
    %v1265 = vadd.f32 %v321, %v1264
    %v1266 = vpop.f32.mrb[0].mxu0
    %1267 = vmatprep.mubr.bf16.mxu0 %v748
    %1268 = vmatmul.mubr.bf16.gmra.mrb[0].mxu0 %v747
    %v1269 = vpop.f32.mrb[0].mxu0
    %v1270 = vadd.f32 %v321, %v1269
    %v1271 = vpop.f32.mrb[0].mxu0
    %v1272 = vpop.f32.mrb[0].mxu0
    %v1273 = vadd.f32 %v321, %v1272
    %v1274 = vpop.f32.mrb[0].mxu0
    %1275 = vmatprep.mubr.bf16.mxu0 %v752
    %1276 = vmatmul.mubr.bf16.gmra.mrb[0].mxu0 %v751
    %v1277 = vpop.f32.mrb[0].mxu0
    %v1278 = vadd.f32 %v321, %v1277
    %v1279 = vpop.f32.mrb[0].mxu0
    %v1280 = vpop.f32.mrb[0].mxu0
    %v1281 = vadd.f32 %v321, %v1280
    %v1282 = vpop.f32.mrb[0].mxu0
    %1283 = vmatprep.mubr.bf16.mxu0 %v756
    %1284 = vmatmul.mubr.bf16.gmra.mrb[0].mxu0 %v755
    %v1285 = vpop.f32.mrb[0].mxu0
    %v1286 = vadd.f32 %v321, %v1285
    %v1287 = vpop.f32.mrb[0].mxu0
    %v1288 = vpop.f32.mrb[0].mxu0
    %v1289 = vadd.f32 %v321, %v1288
    %v1290 = vpop.f32.mrb[0].mxu0
    %1291 = vmatprep.mubr.bf16.mxu0 %v760
    %1292 = vmatmul.mubr.bf16.gmra.mrb[0].mxu0 %v759
    %v1293 = vpop.f32.mrb[0].mxu0
    %v1294 = vadd.f32 %v321, %v1293
    %v1295 = vpop.f32.mrb[0].mxu0
    %v1296 = vpop.f32.mrb[0].mxu0
    %v1297 = vadd.f32 %v321, %v1296
    %v1298 = vpop.f32.mrb[0].mxu0
    %1299 = vmatprep.mubr.bf16.mxu0 %v764
    %1300 = vmatmul.mubr.bf16.gmra.mrb[0].mxu0 %v763
    %v1301 = vpop.f32.mrb[0].mxu0
    %v1302 = vadd.f32 %v321, %v1301
    %v1303 = vpop.f32.mrb[0].mxu0
    %v1304 = vpop.f32.mrb[0].mxu0
    %v1305 = vadd.f32 %v321, %v1304
    %v1306 = vpop.f32.mrb[0].mxu0
    %1307 = vmatprep.mubr.bf16.mxu0 %v768
    %1308 = vmatmul.mubr.bf16.gmra.mrb[0].mxu0 %v767
    %v1309 = vpop.f32.mrb[0].mxu0
    %v1310 = vadd.f32 %v321, %v1309
    %v1311 = vpop.f32.mrb[0].mxu0
    %v1312 = vpop.f32.mrb[0].mxu0
    %v1313 = vadd.f32 %v321, %v1312
    %v1314 = vpop.f32.mrb[0].mxu0
    %1315 = vmatprep.mubr.bf16.mxu0 %v772
    %1316 = vmatmul.mubr.bf16.gmra.mrb[0].mxu0 %v771
    %v1317 = vpop.f32.mrb[0].mxu0
    %v1318 = vadd.f32 %v321, %v1317
    %v1319 = vpop.f32.mrb[0].mxu0
    %v1320 = vpop.f32.mrb[0].mxu0
    %v1321 = vadd.f32 %v321, %v1320
    %v1322 = vpop.f32.mrb[0].mxu0
    %1323 = vmatprep.mubr.bf16.mxu0 %v776
    %1324 = vmatmul.mubr.bf16.gmra.mrb[0].mxu0 %v775
    %v1325 = vpop.f32.mrb[0].mxu0
    %v1326 = vadd.f32 %v321, %v1325
    %v1327 = vpop.f32.mrb[0].mxu0
    %v1328 = vpop.f32.mrb[0].mxu0
    %v1329 = vadd.f32 %v321, %v1328
    %v1330 = vpop.f32.mrb[0].mxu0
    %1331 = vmatprep.mubr.bf16.mxu0 %v780
    %1332 = vmatmul.mubr.bf16.gmra.mrb[0].mxu0 %v779
    %v1333 = vpop.f32.mrb[0].mxu0
    %v1334 = vadd.f32 %v321, %v1333
    %v1335 = vpop.f32.mrb[0].mxu0
    %v1336 = vpop.f32.mrb[0].mxu0
    %v1337 = vadd.f32 %v321, %v1336
    %v1338 = vpop.f32.mrb[0].mxu0
    %1339 = vmatprep.mubr.bf16.mxu0 %v784
    %1340 = vmatmul.mubr.bf16.gmra.mrb[0].mxu0 %v783
    %v1341 = vpop.f32.mrb[0].mxu0
    %v1342 = vadd.f32 %v321, %v1341
    %v1343 = vpop.f32.mrb[0].mxu0
    %v1344 = vpop.f32.mrb[0].mxu0
    %v1345 = vadd.f32 %v321, %v1344
    %v1346 = vpop.f32.mrb[0].mxu0
    %1347 = vmatprep.mubr.bf16.mxu0 %v788
    %1348 = vmatmul.mubr.bf16.gmra.mrb[0].mxu0 %v787
    %v1349 = vpop.f32.mrb[0].mxu0
    %v1350 = vadd.f32 %v321, %v1349
    %v1351 = vpop.f32.mrb[0].mxu0
    %v1352 = vpop.f32.mrb[0].mxu0
    %v1353 = vadd.f32 %v321, %v1352
    %v1354 = vpop.f32.mrb[0].mxu0
    %1355 = vmatprep.mubr.bf16.mxu0 %v792
    %1356 = vmatmul.mubr.bf16.gmra.mrb[0].mxu0 %v791
    %v1357 = vpop.f32.mrb[0].mxu0
    %v1358 = vadd.f32 %v321, %v1357
    %v1359 = vpop.f32.mrb[0].mxu0
    %v1360 = vpop.f32.mrb[0].mxu0
    %v1361 = vadd.f32 %v321, %v1360
    %v1362 = vpop.f32.mrb[0].mxu0
    %1363 = vmatprep.mubr.bf16.mxu0 %v796
    %1364 = vmatmul.mubr.bf16.gmra.mrb[0].mxu0 %v795
    %v1365 = vpop.f32.mrb[0].mxu0
    %v1366 = vadd.f32 %v321, %v1365
    %v1367 = vpop.f32.mrb[0].mxu0
    %v1368 = vpop.f32.mrb[0].mxu0
    %v1369 = vadd.f32 %v321, %v1368
    %v1370 = vpop.f32.mrb[0].mxu0
    %1371 = vmatprep.mubr.bf16.mxu0 %v800
    %1372 = vmatmul.mubr.bf16.gmra.mrb[0].mxu0 %v799
    %v1373 = vpop.f32.mrb[0].mxu0
    %v1374 = vadd.f32 %v321, %v1373
    %v1375 = vpop.f32.mrb[0].mxu0
    %v1376 = vpop.f32.mrb[0].mxu0
    %v1377 = vadd.f32 %v321, %v1376
    %v1378 = vpop.f32.mrb[0].mxu0
    %1379 = vmatprep.mubr.bf16.mxu0 %v804
    %1380 = vmatmul.mubr.bf16.gmra.mrb[0].mxu0 %v803
    %v1381 = vpop.f32.mrb[0].mxu0
    %v1382 = vadd.f32 %v321, %v1381
    %v1383 = vpop.f32.mrb[0].mxu0
    %v1384 = vpop.f32.mrb[0].mxu0
    %v1385 = vadd.f32 %v321, %v1384
    %v1386 = vpop.f32.mrb[0].mxu0
    %1387 = vmatprep.mubr.bf16.mxu0 %v808
    %1388 = vmatmul.mubr.bf16.gmra.mrb[0].mxu0 %v807
    %v1389 = vpop.f32.mrb[0].mxu0
    %v1390 = vadd.f32 %v321, %v1389
    %v1391 = vpop.f32.mrb[0].mxu0
    %v1392 = vpop.f32.mrb[0].mxu0
    %v1393 = vadd.f32 %v321, %v1392
    %v1394 = vpop.f32.mrb[0].mxu0
    %1395 = vmatprep.mubr.bf16.mxu0 %v812
    %1396 = vmatmul.mubr.bf16.gmra.mrb[0].mxu0 %v811
    %v1397 = vpop.f32.mrb[0].mxu0
    %v1398 = vadd.f32 %v321, %v1397
    %v1399 = vpop.f32.mrb[0].mxu0
    %v1400 = vpop.f32.mrb[0].mxu0
    %v1401 = vadd.f32 %v321, %v1400
    %v1402 = vpop.f32.mrb[0].mxu0
    %1403 = vmatprep.mubr.bf16.mxu0 %v816
    %1404 = vmatmul.mubr.bf16.gmra.mrb[0].mxu0 %v815
    %v1405 = vpop.f32.mrb[0].mxu0
    %v1406 = vadd.f32 %v321, %v1405
    %v1407 = vpop.f32.mrb[0].mxu0
    %v1408 = vpop.f32.mrb[0].mxu0
    %v1409 = vadd.f32 %v321, %v1408
    %v1410 = vpop.f32.mrb[0].mxu0
    %1411 = vmatprep.mubr.bf16.mxu0 %v820
    %1412 = vmatmul.mubr.bf16.gmra.mrb[0].mxu0 %v819
    %v1413 = vpop.f32.mrb[0].mxu0
    %v1414 = vadd.f32 %v321, %v1413
    %v1415 = vpop.f32.mrb[0].mxu0
    %v1416 = vpop.f32.mrb[0].mxu0
    %v1417 = vadd.f32 %v321, %v1416
    %v1418 = vpop.f32.mrb[0].mxu0
    %1419 = vmatprep.mubr.bf16.mxu0 %v824
    %1420 = vmatmul.mubr.bf16.gmra.mrb[0].mxu0 %v823
    %v1421 = vpop.f32.mrb[0].mxu0
    %v1422 = vadd.f32 %v321, %v1421
    %v1423 = vpop.f32.mrb[0].mxu0
    %v1424 = vpop.f32.mrb[0].mxu0
    %v1425 = vadd.f32 %v321, %v1424
    %v1426 = vpop.f32.mrb[0].mxu0
    %1427 = vmatprep.mubr.bf16.mxu0 %v828
    %1428 = vmatmul.mubr.bf16.gmra.mrb[0].mxu0 %v827
    %v1429 = vpop.f32.mrb[0].mxu0
    %v1430 = vadd.f32 %v321, %v1429
    %v1431 = vpop.f32.mrb[0].mxu0
    %v1432 = vpop.f32.mrb[0].mxu0
    %v1433 = vadd.f32 %v321, %v1432
    %v1434 = vpop.f32.mrb[0].mxu0
    %1435 = vmatprep.mubr.bf16.mxu0 %v832
    %1436 = vmatmul.mubr.bf16.gmra.mrb[0].mxu0 %v831
    %v1437 = vpop.f32.mrb[0].mxu0
    %v1438 = vadd.f32 %v321, %v1437
    %v1439 = vpop.f32.mrb[0].mxu0
    %v1440 = vpop.f32.mrb[0].mxu0
    %v1441 = vadd.f32 %v321, %v1440
    %v1442 = vpop.f32.mrb[0].mxu0
    %1443 = vdwg.mxu0
    %1444 = vmatprep.subr.bf16.mxu0 0
    %1445 = vmatpush1.bf16.msra.mxu0 %v1107
    %1446 = vmatprep.subr.bf16.mxu0 0
    %1447 = vmatpush1.bf16.msra.mxu0 %v1108
    %1448 = vmatprep.subr.bf16.mxu0 0
    %1449 = vmatpush1.bf16.msra.mxu0 %v1109
    %1450 = vmatprep.subr.bf16.mxu0 0
    %1451 = vmatpush1.bf16.msra.mxu0 %v1110
    %1452 = vmatprep.subr.bf16.mxu0 0
    %1453 = vmatpush1.bf16.msra.mxu0 %v1111
    %1454 = vmatprep.subr.bf16.mxu0 0
    %1455 = vmatpush1.bf16.msra.mxu0 %v1112
    %1456 = vmatprep.subr.bf16.mxu0 0
    %1457 = vmatpush1.bf16.msra.mxu0 %v1113
    %1458 = vmatprep.subr.bf16.mxu0 0
    %1459 = vmatpush1.bf16.msra.mxu0 %v1114
    %1460 = vmatprep.subr.bf16.mxu0 0
    %1461 = vmatpush1.bf16.msra.mxu0 %v1115
    %1462 = vmatprep.subr.bf16.mxu0 0
    %1463 = vmatpush1.bf16.msra.mxu0 %v1116
    %1464 = vmatprep.subr.bf16.mxu0 0
    %1465 = vmatpush1.bf16.msra.mxu0 %v1117
    %1466 = vmatprep.subr.bf16.mxu0 0
    %1467 = vmatpush1.bf16.msra.mxu0 %v1118
    %1468 = vmatprep.subr.bf16.mxu0 0
    %1469 = vmatpush1.bf16.msra.mxu0 %v1119
    %1470 = vmatprep.subr.bf16.mxu0 0
    %1471 = vmatpush1.bf16.msra.mxu0 %v1120
    %1472 = vmatprep.subr.bf16.mxu0 0
    %1473 = vmatpush1.bf16.msra.mxu0 %v1121
    %1474 = vmatprep.subr.bf16.mxu0 0
    %1475 = vmatpush1.bf16.msra.mxu0 %v1122
    %1476 = vmatprep.mubr.bf16.mxu0 %v710
    %1477 = vmatmul.mubr.bf16.gmra.mrb[0].mxu0 %v709
    %v1478 = vpop.f32.mrb[0].mxu0
    %v1479 = vadd.f32 %v1190, %v1478
    %v1480 = vpop.f32.mrb[0].mxu0
    %v1481 = vpop.f32.mrb[0].mxu0
    %v1482 = vadd.f32 %v1193, %v1481
    %v1483 = vpop.f32.mrb[0].mxu0
    %1484 = vmatprep.mubr.bf16.mxu0 %v714
    %1485 = vmatmul.mubr.bf16.gmra.mrb[0].mxu0 %v713
    %v1486 = vpop.f32.mrb[0].mxu0
    %v1487 = vadd.f32 %v1198, %v1486
    %v1488 = vpop.f32.mrb[0].mxu0
    %v1489 = vpop.f32.mrb[0].mxu0
    %v1490 = vadd.f32 %v1201, %v1489
    %v1491 = vpop.f32.mrb[0].mxu0
    %1492 = vmatprep.mubr.bf16.mxu0 %v718
    %1493 = vmatmul.mubr.bf16.gmra.mrb[0].mxu0 %v717
    %v1494 = vpop.f32.mrb[0].mxu0
    %v1495 = vadd.f32 %v1206, %v1494
    %v1496 = vpop.f32.mrb[0].mxu0
    %v1497 = vpop.f32.mrb[0].mxu0
    %v1498 = vadd.f32 %v1209, %v1497
    %v1499 = vpop.f32.mrb[0].mxu0
    %1500 = vmatprep.mubr.bf16.mxu0 %v722
    %1501 = vmatmul.mubr.bf16.gmra.mrb[0].mxu0 %v721
    %v1502 = vpop.f32.mrb[0].mxu0
    %v1503 = vadd.f32 %v1214, %v1502
    %v1504 = vpop.f32.mrb[0].mxu0
    %v1505 = vpop.f32.mrb[0].mxu0
    %v1506 = vadd.f32 %v1217, %v1505
    %v1507 = vpop.f32.mrb[0].mxu0
    %1508 = vmatprep.mubr.bf16.mxu0 %v726
    %1509 = vmatmul.mubr.bf16.gmra.mrb[0].mxu0 %v725
    %v1510 = vpop.f32.mrb[0].mxu0
    %v1511 = vadd.f32 %v1222, %v1510
    %v1512 = vpop.f32.mrb[0].mxu0
    %v1513 = vpop.f32.mrb[0].mxu0
    %v1514 = vadd.f32 %v1225, %v1513
    %v1515 = vpop.f32.mrb[0].mxu0
    %1516 = vmatprep.mubr.bf16.mxu0 %v730
    %1517 = vmatmul.mubr.bf16.gmra.mrb[0].mxu0 %v729
    %v1518 = vpop.f32.mrb[0].mxu0
    %v1519 = vadd.f32 %v1230, %v1518
    %v1520 = vpop.f32.mrb[0].mxu0
    %v1521 = vpop.f32.mrb[0].mxu0
    %v1522 = vadd.f32 %v1233, %v1521
    %v1523 = vpop.f32.mrb[0].mxu0
    %1524 = vmatprep.mubr.bf16.mxu0 %v734
    %1525 = vmatmul.mubr.bf16.gmra.mrb[0].mxu0 %v733
    %v1526 = vpop.f32.mrb[0].mxu0
    %v1527 = vadd.f32 %v1238, %v1526
    %v1528 = vpop.f32.mrb[0].mxu0
    %v1529 = vpop.f32.mrb[0].mxu0
    %v1530 = vadd.f32 %v1241, %v1529
    %v1531 = vpop.f32.mrb[0].mxu0
    %1532 = vmatprep.mubr.bf16.mxu0 %v738
    %1533 = vmatmul.mubr.bf16.gmra.mrb[0].mxu0 %v737
    %v1534 = vpop.f32.mrb[0].mxu0
    %v1535 = vadd.f32 %v1246, %v1534
    %v1536 = vpop.f32.mrb[0].mxu0
    %v1537 = vpop.f32.mrb[0].mxu0
    %v1538 = vadd.f32 %v1249, %v1537
    %v1539 = vpop.f32.mrb[0].mxu0
    %1540 = vmatprep.mubr.bf16.mxu0 %v742
    %1541 = vmatmul.mubr.bf16.gmra.mrb[0].mxu0 %v741
    %v1542 = vpop.f32.mrb[0].mxu0
    %v1543 = vadd.f32 %v1254, %v1542
    %v1544 = vpop.f32.mrb[0].mxu0
    %v1545 = vpop.f32.mrb[0].mxu0
    %v1546 = vadd.f32 %v1257, %v1545
    %v1547 = vpop.f32.mrb[0].mxu0
    %1548 = vmatprep.mubr.bf16.mxu0 %v746
    %1549 = vmatmul.mubr.bf16.gmra.mrb[0].mxu0 %v745
    %v1550 = vpop.f32.mrb[0].mxu0
    %v1551 = vadd.f32 %v1262, %v1550
    %v1552 = vpop.f32.mrb[0].mxu0
    %v1553 = vpop.f32.mrb[0].mxu0
    %v1554 = vadd.f32 %v1265, %v1553
    %v1555 = vpop.f32.mrb[0].mxu0
    %1556 = vmatprep.mubr.bf16.mxu0 %v750
    %1557 = vmatmul.mubr.bf16.gmra.mrb[0].mxu0 %v749
    %v1558 = vpop.f32.mrb[0].mxu0
    %v1559 = vadd.f32 %v1270, %v1558
    %v1560 = vpop.f32.mrb[0].mxu0
    %v1561 = vpop.f32.mrb[0].mxu0
    %v1562 = vadd.f32 %v1273, %v1561
    %v1563 = vpop.f32.mrb[0].mxu0
    %1564 = vmatprep.mubr.bf16.mxu0 %v754
    %1565 = vmatmul.mubr.bf16.gmra.mrb[0].mxu0 %v753
    %v1566 = vpop.f32.mrb[0].mxu0
    %v1567 = vadd.f32 %v1278, %v1566
    %v1568 = vpop.f32.mrb[0].mxu0
    %v1569 = vpop.f32.mrb[0].mxu0
    %v1570 = vadd.f32 %v1281, %v1569
    %v1571 = vpop.f32.mrb[0].mxu0
    %1572 = vmatprep.mubr.bf16.mxu0 %v758
    %1573 = vmatmul.mubr.bf16.gmra.mrb[0].mxu0 %v757
    %v1574 = vpop.f32.mrb[0].mxu0
    %v1575 = vadd.f32 %v1286, %v1574
    %v1576 = vpop.f32.mrb[0].mxu0
    %v1577 = vpop.f32.mrb[0].mxu0
    %v1578 = vadd.f32 %v1289, %v1577
    %v1579 = vpop.f32.mrb[0].mxu0
    %1580 = vmatprep.mubr.bf16.mxu0 %v762
    %1581 = vmatmul.mubr.bf16.gmra.mrb[0].mxu0 %v761
    %v1582 = vpop.f32.mrb[0].mxu0
    %v1583 = vadd.f32 %v1294, %v1582
    %v1584 = vpop.f32.mrb[0].mxu0
    %v1585 = vpop.f32.mrb[0].mxu0
    %v1586 = vadd.f32 %v1297, %v1585
    %v1587 = vpop.f32.mrb[0].mxu0
    %1588 = vmatprep.mubr.bf16.mxu0 %v766
    %1589 = vmatmul.mubr.bf16.gmra.mrb[0].mxu0 %v765
    %v1590 = vpop.f32.mrb[0].mxu0
    %v1591 = vadd.f32 %v1302, %v1590
    %v1592 = vpop.f32.mrb[0].mxu0
    %v1593 = vpop.f32.mrb[0].mxu0
    %v1594 = vadd.f32 %v1305, %v1593
    %v1595 = vpop.f32.mrb[0].mxu0
    %1596 = vmatprep.mubr.bf16.mxu0 %v770
    %1597 = vmatmul.mubr.bf16.gmra.mrb[0].mxu0 %v769
    %v1598 = vpop.f32.mrb[0].mxu0
    %v1599 = vadd.f32 %v1310, %v1598
    %v1600 = vpop.f32.mrb[0].mxu0
    %v1601 = vpop.f32.mrb[0].mxu0
    %v1602 = vadd.f32 %v1313, %v1601
    %v1603 = vpop.f32.mrb[0].mxu0
    %1604 = vmatprep.mubr.bf16.mxu0 %v774
    %1605 = vmatmul.mubr.bf16.gmra.mrb[0].mxu0 %v773
    %v1606 = vpop.f32.mrb[0].mxu0
    %v1607 = vadd.f32 %v1318, %v1606
    %v1608 = vpop.f32.mrb[0].mxu0
    %v1609 = vpop.f32.mrb[0].mxu0
    %v1610 = vadd.f32 %v1321, %v1609
    %v1611 = vpop.f32.mrb[0].mxu0
    %1612 = vmatprep.mubr.bf16.mxu0 %v778
    %1613 = vmatmul.mubr.bf16.gmra.mrb[0].mxu0 %v777
    %v1614 = vpop.f32.mrb[0].mxu0
    %v1615 = vadd.f32 %v1326, %v1614
    %v1616 = vpop.f32.mrb[0].mxu0
    %v1617 = vpop.f32.mrb[0].mxu0
    %v1618 = vadd.f32 %v1329, %v1617
    %v1619 = vpop.f32.mrb[0].mxu0
    %1620 = vmatprep.mubr.bf16.mxu0 %v782
    %1621 = vmatmul.mubr.bf16.gmra.mrb[0].mxu0 %v781
    %v1622 = vpop.f32.mrb[0].mxu0
    %v1623 = vadd.f32 %v1334, %v1622
    %v1624 = vpop.f32.mrb[0].mxu0
    %v1625 = vpop.f32.mrb[0].mxu0
    %v1626 = vadd.f32 %v1337, %v1625
    %v1627 = vpop.f32.mrb[0].mxu0
    %1628 = vmatprep.mubr.bf16.mxu0 %v786
    %1629 = vmatmul.mubr.bf16.gmra.mrb[0].mxu0 %v785
    %v1630 = vpop.f32.mrb[0].mxu0
    %v1631 = vadd.f32 %v1342, %v1630
    %v1632 = vpop.f32.mrb[0].mxu0
    %v1633 = vpop.f32.mrb[0].mxu0
    %v1634 = vadd.f32 %v1345, %v1633
    %v1635 = vpop.f32.mrb[0].mxu0
    %1636 = vmatprep.mubr.bf16.mxu0 %v790
    %1637 = vmatmul.mubr.bf16.gmra.mrb[0].mxu0 %v789
    %v1638 = vpop.f32.mrb[0].mxu0
    %v1639 = vadd.f32 %v1350, %v1638
    %v1640 = vpop.f32.mrb[0].mxu0
    %v1641 = vpop.f32.mrb[0].mxu0
    %v1642 = vadd.f32 %v1353, %v1641
    %v1643 = vpop.f32.mrb[0].mxu0
    %1644 = vmatprep.mubr.bf16.mxu0 %v794
    %1645 = vmatmul.mubr.bf16.gmra.mrb[0].mxu0 %v793
    %v1646 = vpop.f32.mrb[0].mxu0
    %v1647 = vadd.f32 %v1358, %v1646
    %v1648 = vpop.f32.mrb[0].mxu0
    %v1649 = vpop.f32.mrb[0].mxu0
    %v1650 = vadd.f32 %v1361, %v1649
    %v1651 = vpop.f32.mrb[0].mxu0
    %1652 = vmatprep.mubr.bf16.mxu0 %v798
    %1653 = vmatmul.mubr.bf16.gmra.mrb[0].mxu0 %v797
    %v1654 = vpop.f32.mrb[0].mxu0
    %v1655 = vadd.f32 %v1366, %v1654
    %v1656 = vpop.f32.mrb[0].mxu0
    %v1657 = vpop.f32.mrb[0].mxu0
    %v1658 = vadd.f32 %v1369, %v1657
    %v1659 = vpop.f32.mrb[0].mxu0
    %1660 = vmatprep.mubr.bf16.mxu0 %v802
    %1661 = vmatmul.mubr.bf16.gmra.mrb[0].mxu0 %v801
    %v1662 = vpop.f32.mrb[0].mxu0
    %v1663 = vadd.f32 %v1374, %v1662
    %v1664 = vpop.f32.mrb[0].mxu0
    %v1665 = vpop.f32.mrb[0].mxu0
    %v1666 = vadd.f32 %v1377, %v1665
    %v1667 = vpop.f32.mrb[0].mxu0
    %1668 = vmatprep.mubr.bf16.mxu0 %v806
    %1669 = vmatmul.mubr.bf16.gmra.mrb[0].mxu0 %v805
    %v1670 = vpop.f32.mrb[0].mxu0
    %v1671 = vadd.f32 %v1382, %v1670
    %v1672 = vpop.f32.mrb[0].mxu0
    %v1673 = vpop.f32.mrb[0].mxu0
    %v1674 = vadd.f32 %v1385, %v1673
    %v1675 = vpop.f32.mrb[0].mxu0
    %1676 = vmatprep.mubr.bf16.mxu0 %v810
    %1677 = vmatmul.mubr.bf16.gmra.mrb[0].mxu0 %v809
    %v1678 = vpop.f32.mrb[0].mxu0
    %v1679 = vadd.f32 %v1390, %v1678
    %v1680 = vpop.f32.mrb[0].mxu0
    %v1681 = vpop.f32.mrb[0].mxu0
    %v1682 = vadd.f32 %v1393, %v1681
    %v1683 = vpop.f32.mrb[0].mxu0
    %1684 = vmatprep.mubr.bf16.mxu0 %v814
    %1685 = vmatmul.mubr.bf16.gmra.mrb[0].mxu0 %v813
    %v1686 = vpop.f32.mrb[0].mxu0
    %v1687 = vadd.f32 %v1398, %v1686
    %v1688 = vpop.f32.mrb[0].mxu0
    %v1689 = vpop.f32.mrb[0].mxu0
    %v1690 = vadd.f32 %v1401, %v1689
    %v1691 = vpop.f32.mrb[0].mxu0
    %1692 = vmatprep.mubr.bf16.mxu0 %v818
    %1693 = vmatmul.mubr.bf16.gmra.mrb[0].mxu0 %v817
    %v1694 = vpop.f32.mrb[0].mxu0
    %v1695 = vadd.f32 %v1406, %v1694
    %v1696 = vpop.f32.mrb[0].mxu0
    %v1697 = vpop.f32.mrb[0].mxu0
    %v1698 = vadd.f32 %v1409, %v1697
    %v1699 = vpop.f32.mrb[0].mxu0
    %1700 = vmatprep.mubr.bf16.mxu0 %v822
    %1701 = vmatmul.mubr.bf16.gmra.mrb[0].mxu0 %v821
    %v1702 = vpop.f32.mrb[0].mxu0
    %v1703 = vadd.f32 %v1414, %v1702
    %v1704 = vpop.f32.mrb[0].mxu0
    %v1705 = vpop.f32.mrb[0].mxu0
    %v1706 = vadd.f32 %v1417, %v1705
    %v1707 = vpop.f32.mrb[0].mxu0
    %1708 = vmatprep.mubr.bf16.mxu0 %v826
    %1709 = vmatmul.mubr.bf16.gmra.mrb[0].mxu0 %v825
    %v1710 = vpop.f32.mrb[0].mxu0
    %v1711 = vadd.f32 %v1422, %v1710
    %v1712 = vpop.f32.mrb[0].mxu0
    %v1713 = vpop.f32.mrb[0].mxu0
    %v1714 = vadd.f32 %v1425, %v1713
    %v1715 = vpop.f32.mrb[0].mxu0
    %1716 = vmatprep.mubr.bf16.mxu0 %v830
    %1717 = vmatmul.mubr.bf16.gmra.mrb[0].mxu0 %v829
    %v1718 = vpop.f32.mrb[0].mxu0
    %v1719 = vadd.f32 %v1430, %v1718
    %v1720 = vpop.f32.mrb[0].mxu0
    %v1721 = vpop.f32.mrb[0].mxu0
    %v1722 = vadd.f32 %v1433, %v1721
    %v1723 = vpop.f32.mrb[0].mxu0
    %1724 = vmatprep.mubr.bf16.mxu0 %v834
    %1725 = vmatmul.mubr.bf16.gmra.mrb[0].mxu0 %v833
    %v1726 = vpop.f32.mrb[0].mxu0
    %v1727 = vadd.f32 %v1438, %v1726
    %v1728 = vpop.f32.mrb[0].mxu0
    %v1729 = vpop.f32.mrb[0].mxu0
    %v1730 = vadd.f32 %v1441, %v1729
    %v1731 = vpop.f32.mrb[0].mxu0
    %1732 = vdwg.mxu0
    %v1733 = vmul.f32 %v252, %v1479
    %v1734 = vmul.f32 %v253, %v1482
    %v1735 = vmul.f32 %v254, %v1487
    %v1736 = vmul.f32 %v255, %v1490
    %v1737 = vmul.f32 %v256, %v1495
    %v1738 = vmul.f32 %v257, %v1498
    %v1739 = vmul.f32 %v258, %v1503
    %v1740 = vmul.f32 %v259, %v1506
    %v1741 = vmul.f32 %v260, %v1511
    %v1742 = vmul.f32 %v261, %v1514
    %v1743 = vmul.f32 %v262, %v1519
    %v1744 = vmul.f32 %v263, %v1522
    %v1745 = vmul.f32 %v264, %v1527
    %v1746 = vmul.f32 %v265, %v1530
    %v1747 = vmul.f32 %v266, %v1535
    %v1748 = vmul.f32 %v267, %v1538
    %v1749 = vmul.f32 %v268, %v1543
    %v1750 = vmul.f32 %v269, %v1546
    %v1751 = vmul.f32 %v270, %v1551
    %v1752 = vmul.f32 %v271, %v1554
    %v1753 = vmul.f32 %v272, %v1559
    %v1754 = vmul.f32 %v273, %v1562
    %v1755 = vmul.f32 %v274, %v1567
    %v1756 = vmul.f32 %v275, %v1570
    %v1757 = vmul.f32 %v276, %v1575
    %v1758 = vmul.f32 %v277, %v1578
    %v1759 = vmul.f32 %v278, %v1583
    %v1760 = vmul.f32 %v279, %v1586
    %v1761 = vmul.f32 %v280, %v1591
    %v1762 = vmul.f32 %v281, %v1594
    %v1763 = vmul.f32 %v282, %v1599
    %v1764 = vmul.f32 %v283, %v1602
    %v1765 = vmul.f32 %v284, %v1607
    %v1766 = vmul.f32 %v285, %v1610
    %v1767 = vmul.f32 %v286, %v1615
    %v1768 = vmul.f32 %v287, %v1618
    %v1769 = vmul.f32 %v288, %v1623
    %v1770 = vmul.f32 %v289, %v1626
    %v1771 = vmul.f32 %v290, %v1631
    %v1772 = vmul.f32 %v291, %v1634
    %v1773 = vmul.f32 %v292, %v1639
    %v1774 = vmul.f32 %v293, %v1642
    %v1775 = vmul.f32 %v294, %v1647
    %v1776 = vmul.f32 %v295, %v1650
    %v1777 = vmul.f32 %v296, %v1655
    %v1778 = vmul.f32 %v297, %v1658
    %v1779 = vmul.f32 %v298, %v1663
    %v1780 = vmul.f32 %v299, %v1666
    %v1781 = vmul.f32 %v300, %v1671
    %v1782 = vmul.f32 %v301, %v1674
    %v1783 = vmul.f32 %v302, %v1679
    %v1784 = vmul.f32 %v303, %v1682
    %v1785 = vmul.f32 %v304, %v1687
    %v1786 = vmul.f32 %v305, %v1690
    %v1787 = vmul.f32 %v306, %v1695
    %v1788 = vmul.f32 %v307, %v1698
    %v1789 = vmul.f32 %v308, %v1703
    %v1790 = vmul.f32 %v309, %v1706
    %v1791 = vmul.f32 %v310, %v1711
    %v1792 = vmul.f32 %v311, %v1714
    %v1793 = vmul.f32 %v312, %v1719
    %v1794 = vmul.f32 %v313, %v1722
    %v1795 = vmul.f32 %v314, %v1727
    %v1796 = vmul.f32 %v315, %v1730
    %1797 = vst [vmem:[#allocation8] sm:$0xff] %v1733
    %1798 = vst [vmem:[#allocation8 + $0x8] sm:$0xff] %v1734
    %1799 = vst [vmem:[#allocation8 + $0x10] sm:$0xff] %v1735
    %1800 = vst [vmem:[#allocation8 + $0x18] sm:$0xff] %v1736
    %1801 = vst [vmem:[#allocation8 + $0x20] sm:$0xff] %v1737
    %1802 = vst [vmem:[#allocation8 + $0x28] sm:$0xff] %v1738
    %1803 = vst [vmem:[#allocation8 + $0x30] sm:$0xff] %v1739
    %1804 = vst [vmem:[#allocation8 + $0x38] sm:$0xff] %v1740
    %1805 = vst [vmem:[#allocation8 + $0x40] sm:$0xff] %v1741
    %1806 = vst [vmem:[#allocation8 + $0x48] sm:$0xff] %v1742
    %1807 = vst [vmem:[#allocation8 + $0x50] sm:$0xff] %v1743
    %1808 = vst [vmem:[#allocation8 + $0x58] sm:$0xff] %v1744
    %1809 = vst [vmem:[#allocation8 + $0x60] sm:$0xff] %v1745
    %1810 = vst [vmem:[#allocation8 + $0x68] sm:$0xff] %v1746
    %1811 = vst [vmem:[#allocation8 + $0x70] sm:$0xff] %v1747
    %1812 = vst [vmem:[#allocation8 + $0x78] sm:$0xff] %v1748
    %1813 = vst [vmem:[#allocation8 + $0x80] sm:$0xff] %v1749
    %1814 = vst [vmem:[#allocation8 + $0x88] sm:$0xff] %v1750
    %1815 = vst [vmem:[#allocation8 + $0x90] sm:$0xff] %v1751
    %1816 = vst [vmem:[#allocation8 + $0x98] sm:$0xff] %v1752
    %1817 = vst [vmem:[#allocation8 + $0xa0] sm:$0xff] %v1753
    %1818 = vst [vmem:[#allocation8 + $0xa8] sm:$0xff] %v1754
    %1819 = vst [vmem:[#allocation8 + $0xb0] sm:$0xff] %v1755
    %1820 = vst [vmem:[#allocation8 + $0xb8] sm:$0xff] %v1756
    %1821 = vst [vmem:[#allocation8 + $0xc0] sm:$0xff] %v1757
    %1822 = vst [vmem:[#allocation8 + $0xc8] sm:$0xff] %v1758
    %1823 = vst [vmem:[#allocation8 + $0xd0] sm:$0xff] %v1759
    %1824 = vst [vmem:[#allocation8 + $0xd8] sm:$0xff] %v1760
    %1825 = vst [vmem:[#allocation8 + $0xe0] sm:$0xff] %v1761
    %1826 = vst [vmem:[#allocation8 + $0xe8] sm:$0xff] %v1762
    %1827 = vst [vmem:[#allocation8 + $0xf0] sm:$0xff] %v1763
    %1828 = vst [vmem:[#allocation8 + $0xf8] sm:$0xff] %v1764
    %1829 = vst [vmem:[#allocation8 + $0x100] sm:$0xff] %v1765
    %1830 = vst [vmem:[#allocation8 + $0x108] sm:$0xff] %v1766
    %1831 = vst [vmem:[#allocation8 + $0x110] sm:$0xff] %v1767
    %1832 = vst [vmem:[#allocation8 + $0x118] sm:$0xff] %v1768
    %1833 = vst [vmem:[#allocation8 + $0x120] sm:$0xff] %v1769
    %1834 = vst [vmem:[#allocation8 + $0x128] sm:$0xff] %v1770
    %1835 = vst [vmem:[#allocation8 + $0x130] sm:$0xff] %v1771
    %1836 = vst [vmem:[#allocation8 + $0x138] sm:$0xff] %v1772
    %1837 = vst [vmem:[#allocation8 + $0x140] sm:$0xff] %v1773
    %1838 = vst [vmem:[#allocation8 + $0x148] sm:$0xff] %v1774
    %1839 = vst [vmem:[#allocation8 + $0x150] sm:$0xff] %v1775
    %1840 = vst [vmem:[#allocation8 + $0x158] sm:$0xff] %v1776
    %1841 = vst [vmem:[#allocation8 + $0x160] sm:$0xff] %v1777
    %1842 = vst [vmem:[#allocation8 + $0x168] sm:$0xff] %v1778
    %1843 = vst [vmem:[#allocation8 + $0x170] sm:$0xff] %v1779
    %1844 = vst [vmem:[#allocation8 + $0x178] sm:$0xff] %v1780
    %1845 = vst [vmem:[#allocation8 + $0x180] sm:$0xff] %v1781
    %1846 = vst [vmem:[#allocation8 + $0x188] sm:$0xff] %v1782
    %1847 = vst [vmem:[#allocation8 + $0x190] sm:$0xff] %v1783
    %1848 = vst [vmem:[#allocation8 + $0x198] sm:$0xff] %v1784
    %1849 = vst [vmem:[#allocation8 + $0x1a0] sm:$0xff] %v1785
    %1850 = vst [vmem:[#allocation8 + $0x1a8] sm:$0xff] %v1786
    %1851 = vst [vmem:[#allocation8 + $0x1b0] sm:$0xff] %v1787
    %1852 = vst [vmem:[#allocation8 + $0x1b8] sm:$0xff] %v1788
    %1853 = vst [vmem:[#allocation8 + $0x1c0] sm:$0xff] %v1789
    %1854 = vst [vmem:[#allocation8 + $0x1c8] sm:$0xff] %v1790
    %1855 = vst [vmem:[#allocation8 + $0x1d0] sm:$0xff] %v1791
    %1856 = vst [vmem:[#allocation8 + $0x1d8] sm:$0xff] %v1792
    %1857 = vst [vmem:[#allocation8 + $0x1e0] sm:$0xff] %v1793
    %1858 = vst [vmem:[#allocation8 + $0x1e8] sm:$0xff] %v1794
    %1859 = vst [vmem:[#allocation8 + $0x1f0] sm:$0xff] %v1795
    %1860 = vst [vmem:[#allocation8 + $0x1f8] sm:$0xff] %v1796
    // Predicated region
    $region30: #{_cdaam_pallas.1} parent=1 // pred_check
      _
    $region31: #{_cdaam_pallas.1} parent=1 // pred_check_branch
      %1862 = sbr.rel (0) target = $region33
    $region32: #{_cdaam_pallas.1} parent=1 // pred_region
      %s1864 = ssub.s32 8192, 8192
      %1865 = vsyncadd [#allocation4], %s1864
      %s1866 = sshll.u32 [#allocation8], 4
      %s1867 = int_to_ptr.vmem [resolvable:$true] %s1866
      %1872 = dma.vmem_to_hbm [thread:$0]  %s1867, 8192, %s4, [#allocation4], 128, 128, 8
    $region33: #{_cdaam_pallas.1} parent=1 // pred_fallthru
      _
    // Predicated region
    $region34: #{_cdaam_pallas.1} parent=1 // pred_check
      _
    $region35: #{_cdaam_pallas.1} parent=1 // pred_check_branch
      %1874 = sbr.rel (0) target = $region37
    $region36: #{_cdaam_pallas.1} parent=1 // pred_region
      %1875 = dma.done [#allocation4], 8192
    $region37: #{_cdaam_pallas.1} parent=1 // pred_fallthru
      _
    %1876 = vsyncpa [#allocation3], 1
    %1877 = vsyncpa [#allocation6], 1
    %1878 = vsyncpa [#allocation4], 1

</llo_original>
